<compile_context>
chip_gen: v5e
topology: v5e:2x2
jax: 0.10.0
libtpu: 0.0.40
codegen_flags: <defaults>
</compile_context>

<pallas_src>
import jax
import jax.numpy as jnp
from jax.experimental import pallas as pl
from jax.experimental.pallas import tpu as pltpu


# ----------------------------- Pallas kernels ------------------------------

def _conv_pool_relu_kernel(p_ref, w_ref, b_ref, o_ref):
    """Fused conv-as-matmul + 2x2 max-pool + bias + ReLU.

    p_ref : (4, TQ, K) bf16  im2col patches; leading dim = the four (dh, dw)
                             offsets inside each 2x2 pool window, rows within
                             a block ordered (batch, ph, pw).
    w_ref : (K, C)   bf16    conv weights, rows ordered (kh, kw, cin).
    b_ref : (1, C)   f32
    o_ref : (TQ, C)          relu(max_pool2(conv(x))) rows (batch, ph, pw).
    """
    w = w_ref[...]                                   # load once, reuse 4x
    z0 = jnp.dot(p_ref[0], w, preferred_element_type=jnp.float32)
    z1 = jnp.dot(p_ref[1], w, preferred_element_type=jnp.float32)
    z2 = jnp.dot(p_ref[2], w, preferred_element_type=jnp.float32)
    z3 = jnp.dot(p_ref[3], w, preferred_element_type=jnp.float32)
    # max over the four pool-window positions (bias shared -> add after max).
    z = jnp.maximum(jnp.maximum(z0, z1), jnp.maximum(z2, z3)) + b_ref[...]
    o_ref[...] = jnp.maximum(z, 0.0).astype(o_ref.dtype)


def _head_kernel(x_ref, w1_ref, b1_ref, w2_ref, b2_ref, o_ref):
    """fc1 -> ReLU -> fc2 -> log_softmax, fully fused (weights resident in VMEM)."""
    h = jnp.dot(x_ref[...], w1_ref[...], preferred_element_type=jnp.float32)
    h = jnp.maximum(h + b1_ref[...], 0.0)
    # TODO(synk): F.dropout(training=True) not implemented (inference identity).
    z = jnp.dot(h, w2_ref[...], preferred_element_type=jnp.float32) + b2_ref[...]
    m = jnp.max(z, axis=-1, keepdims=True)
    s = z - m
    o_ref[...] = s - jnp.log(jnp.sum(jnp.exp(s), axis=-1, keepdims=True))


# ------------------------------ call wrappers -------------------------------

def _row_tile(m, target, granularity):
    """Largest multiple-of-`granularity` divisor of m that is <= target, or m."""
    if m <= target:
        return m
    t = (target // granularity) * granularity
    while t >= granularity:
        if m % t == 0:
            return t
        t -= granularity
    return m


def conv_pool_relu(patches, wmat, bias, *, out_dtype=jnp.float32, row_tile=2048):
    """patches (4, Q, K) bf16, wmat (K, C) bf16, bias (1, C) f32 -> (Q, C)."""
    _, q, k = patches.shape
    c = wmat.shape[1]
    tq = _row_tile(q, row_tile, 16)
    return pl.pallas_call(
        _conv_pool_relu_kernel,
        out_shape=jax.ShapeDtypeStruct((q, c), out_dtype),
        grid=(q // tq,),
        in_specs=[
            pl.BlockSpec((4, tq, k), lambda i: (0, i, 0)),
            pl.BlockSpec((k, c), lambda i: (0, 0)),   # weights stay resident
            pl.BlockSpec((1, c), lambda i: (0, 0)),
        ],
        out_specs=pl.BlockSpec((tq, c), lambda i: (i, 0)),
        compiler_params=pltpu.CompilerParams(
            dimension_semantics=("parallel",),
            vmem_limit_bytes=32 * 1024 * 1024,
        ),
    )(patches, wmat, bias)


def fc_head(x, w1, b1, w2, b2, *, row_tile=1024):
    """x (M, 320) f32 -> log_softmax(relu(x@w1+b1)@w2+b2), shape (M, 10)."""
    m, kin = x.shape
    cout = w2.shape[1]
    tm = _row_tile(m, row_tile, 8)
    return pl.pallas_call(
        _head_kernel,
        out_shape=jax.ShapeDtypeStruct((m, cout), jnp.float32),
        grid=(m // tm,),
        in_specs=[
            pl.BlockSpec((tm, kin), lambda i: (i, 0)),
            pl.BlockSpec(w1.shape, lambda i: (0, 0)),
            pl.BlockSpec(b1.shape, lambda i: (0, 0)),
            pl.BlockSpec(w2.shape, lambda i: (0, 0)),
            pl.BlockSpec(b2.shape, lambda i: (0, 0)),
        ],
        out_specs=pl.BlockSpec((tm, cout), lambda i: (i, 0)),
        compiler_params=pltpu.CompilerParams(
            dimension_semantics=("parallel",),
            vmem_limit_bytes=32 * 1024 * 1024,
        ),
    )(x, w1, b1, w2, b2)


# ------------------------------- glue (JAX) ---------------------------------

def _pool_ordered_patches(x_nhwc, ksize):
    """im2col with rows pre-ordered for in-kernel pooling.

    x_nhwc: (N, H, W, C) -> (4, N*PH*PW, ksize*ksize*C) bf16 where the leading
    dim indexes the (dh, dw) position inside each 2x2 pool window, rows within
    a block are (n, ph, pw), and columns are ordered (kh, kw, cin).
    """
    n, h, w, c = x_nhwc.shape
    oh, ow = h - ksize + 1, w - ksize + 1
    ph, pw = oh // 2, ow // 2
    cols = []
    for kh in range(ksize):
        for kw in range(ksize):
            cols.append(x_nhwc[:, kh:kh + oh, kw:kw + ow, :])   # (n, oh, ow, c)
    p = jnp.concatenate(cols, axis=-1)                          # (n, oh, ow, k*k*c)
    p = p.reshape(n, ph, 2, pw, 2, ksize * ksize * c)
    p = jnp.transpose(p, (2, 4, 0, 1, 3, 5))                    # (dh, dw, n, ph, pw, K)
    return p.reshape(4, n * ph * pw, ksize * ksize * c).astype(jnp.bfloat16)


def init_params(key):
    """Parameters in PyTorch layout (as nn.Conv2d / nn.Linear store them)."""
    ks = jax.random.split(key, 8)
    s = 0.1
    return {
        "conv1_w": s * jax.random.normal(ks[0], (10, 1, 5, 5), jnp.float32),
        "conv1_b": s * jax.random.normal(ks[1], (10,), jnp.float32),
        "conv2_w": s * jax.random.normal(ks[2], (20, 10, 5, 5), jnp.float32),
        "conv2_b": s * jax.random.normal(ks[3], (20,), jnp.float32),
        "fc1_w":   s * jax.random.normal(ks[4], (50, 320), jnp.float32),
        "fc1_b":   s * jax.random.normal(ks[5], (50,), jnp.float32),
        "fc2_w":   s * jax.random.normal(ks[6], (10, 50), jnp.float32),
        "fc2_b":   s * jax.random.normal(ks[7], (10,), jnp.float32),
    }


def prep_params(p):
    """One-time parameter prep (hoisted out of the forward pass).

    - conv weights -> (K, Cout) matmul layout, rows ordered (kh, kw, cin), bf16.
    - fc1 weight   -> (320, 50) with its 320-dim re-permuted from PyTorch's
      (c, h, w) flatten order to this pipeline's (h, w, c) activation order.
    - biases       -> (1, C) f32 rows.
    """
    w1m = jnp.transpose(p["conv1_w"], (2, 3, 1, 0)).reshape(25, 10)
    w2m = jnp.transpose(p["conv2_w"], (2, 3, 1, 0)).reshape(250, 20)
    fc1m = jnp.transpose(
        jnp.transpose(p["fc1_w"].reshape(50, 20, 4, 4), (0, 2, 3, 1)).reshape(50, 320))
    return {
        "w1m":  w1m.astype(jnp.bfloat16),
        "b1":   p["conv1_b"].reshape(1, 10).astype(jnp.float32),
        "w2m":  w2m.astype(jnp.bfloat16),
        "b2":   p["conv2_b"].reshape(1, 20).astype(jnp.float32),
        "fc1m": fc1m.astype(jnp.float32),
        "fc1b": p["fc1_b"].reshape(1, 50).astype(jnp.float32),
        "fc2m": jnp.transpose(p["fc2_w"]).astype(jnp.float32),
        "fc2b": p["fc2_b"].reshape(1, 10).astype(jnp.float32),
    }


def mnist_conv_forward(prepped, x):
    """x: (N, 1, 28, 28) f32 NCHW (PyTorch layout) -> (N, 10) log-probs."""
    n = x.shape[0]
    x_nhwc = x.reshape(n, 28, 28, 1)                 # Cin=1: NCHW->NHWC is a pure reshape
    p1 = _pool_ordered_patches(x_nhwc, 5)            # (4, n*144, 25) bf16
    # conv1 output is only consumed as bf16 patches -> emit bf16 directly.
    a1 = conv_pool_relu(p1, prepped["w1m"], prepped["b1"],
                        out_dtype=jnp.bfloat16)                 # (n*144, 10) bf16
    # conv2_drop (nn.Dropout2d) is identity in eval mode.
    p2 = _pool_ordered_patches(a1.reshape(n, 12, 12, 10), 5)    # (4, n*16, 250) bf16
    a2 = conv_pool_relu(p2, prepped["w2m"], prepped["b2"],
                        out_dtype=jnp.float32)                  # (n*16, 20) f32
    feats = a2.reshape(n, 320)                       # (h, w, c) order; fc1m permuted to match
    return fc_head(feats, prepped["fc1m"], prepped["fc1b"],
                   prepped["fc2m"], prepped["fc2b"])            # (n, 10)


# ----------------------------- reference check ------------------------------

def _reference_forward(params, x):
    """Pure-JAX (XLA) f32 reference of the PyTorch forward."""
    def conv(h, w, b):
        y = jax.lax.conv_general_dilated(
            h, w, (1, 1), "VALID", dimension_numbers=("NCHW", "OIHW", "NCHW"))
        return y + b.reshape(1, -1, 1, 1)

    def pool_relu(h):
        y = jax.lax.reduce_window(h, -jnp.inf, jax.lax.max,
                                  (1, 1, 2, 2), (1, 1, 2, 2), "VALID")
        return jnp.maximum(y, 0.0)

    h = pool_relu(conv(x, params["conv1_w"], params["conv1_b"]))
    h = pool_relu(conv(h, params["conv2_w"], params["conv2_b"]))
    h = h.reshape(h.shape[0], 320)
    h = jnp.maximum(h @ params["fc1_w"].T + params["fc1_b"], 0.0)
    z = h @ params["fc2_w"].T + params["fc2_b"]
    return jax.nn.log_softmax(z, axis=-1)


if __name__ == "__main__":
    key = jax.random.PRNGKey(0)
    pkey, xkey = jax.random.split(key)
    raw_params = init_params(pkey)
    params = prep_params(raw_params)                 # hoisted, one-time prep
    x = jax.random.normal(xkey, (2, 1, 28, 28), jnp.float32)   # MNIST-shaped input

    fwd = jax.jit(mnist_conv_forward)
    out = jax.block_until_ready(fwd(params, x))
    assert out.shape == (2, 10) and out.dtype == jnp.float32

    ref = jax.block_until_ready(_reference_forward(raw_params, x))
    assert bool(jnp.all(jnp.abs(out - ref) < 5e-2)), "mismatch vs f32 reference"
    print("KERNEL_OK")
</pallas_src>

<mosaic_0001>
module attributes {stable_mosaic.version = 11 : i64} {
  func.func @_conv_pool_relu_kernel(%arg0: i32, %arg1: memref<4x288x25xbf16, #tpu.memory_space<vmem>>, %arg2: memref<25x10xbf16, #tpu.memory_space<vmem>>, %arg3: memref<1x10xf32, #tpu.memory_space<vmem>>, %arg4: memref<288x10xbf16, #tpu.memory_space<vmem>>) attributes {dimension_semantics = [#tpu.dimension_semantics<parallel>], iteration_bounds = array<i64: 1>, scalar_prefetch = 0 : i64, scratch_operands = 0 : i64, tpu.core_type = #tpu.core_type<tc>, window_params = [{transform_indices = @transform_0, window_bounds = array<i64: 4, 288, 25>}, {pipeline_mode = #tpu.pipeline_mode<synchronous>, transform_indices = @transform_1, window_bounds = array<i64: 25, 10>}, {pipeline_mode = #tpu.pipeline_mode<synchronous>, transform_indices = @transform_2, window_bounds = array<i64: 1, 10>}, {transform_indices = @transform_3, window_bounds = array<i64: 288, 10>}]} {
    %c0 = arith.constant 0 : index
    %c0_0 = arith.constant 0 : index
    %0 = vector.load %arg2[%c0, %c0_0] : memref<25x10xbf16, #tpu.memory_space<vmem>>, vector<25x10xbf16>
    %c0_1 = arith.constant 0 : index
    %c0_2 = arith.constant 0 : index
    %c0_3 = arith.constant 0 : index
    %1 = vector.load %arg1[%c0_1, %c0_2, %c0_3] : memref<4x288x25xbf16, #tpu.memory_space<vmem>>, vector<1x288x25xbf16>
    %2 = vector.shape_cast %1 : vector<1x288x25xbf16> to vector<288x25xbf16>
    %cst = arith.constant dense<0.000000e+00> : vector<288x10xf32>
    %3 = tpu.matmul %2, %0, %cst {dimension_numbers = #tpu.dot_dimension_numbers<[1], [0], [0], [1], [0, 0, 1, 1], [], []>} : vector<288x25xbf16>, vector<25x10xbf16>, vector<288x10xf32> -> vector<288x10xf32>
    %c1 = arith.constant 1 : index
    %c0_4 = arith.constant 0 : index
    %c0_5 = arith.constant 0 : index
    %4 = vector.load %arg1[%c1, %c0_4, %c0_5] : memref<4x288x25xbf16, #tpu.memory_space<vmem>>, vector<1x288x25xbf16>
    %5 = vector.shape_cast %4 : vector<1x288x25xbf16> to vector<288x25xbf16>
    %cst_6 = arith.constant dense<0.000000e+00> : vector<288x10xf32>
    %6 = tpu.matmul %5, %0, %cst_6 {dimension_numbers = #tpu.dot_dimension_numbers<[1], [0], [0], [1], [0, 0, 1, 1], [], []>} : vector<288x25xbf16>, vector<25x10xbf16>, vector<288x10xf32> -> vector<288x10xf32>
    %c2 = arith.constant 2 : index
    %c0_7 = arith.constant 0 : index
    %c0_8 = arith.constant 0 : index
    %7 = vector.load %arg1[%c2, %c0_7, %c0_8] : memref<4x288x25xbf16, #tpu.memory_space<vmem>>, vector<1x288x25xbf16>
    %8 = vector.shape_cast %7 : vector<1x288x25xbf16> to vector<288x25xbf16>
    %cst_9 = arith.constant dense<0.000000e+00> : vector<288x10xf32>
    %9 = tpu.matmul %8, %0, %cst_9 {dimension_numbers = #tpu.dot_dimension_numbers<[1], [0], [0], [1], [0, 0, 1, 1], [], []>} : vector<288x25xbf16>, vector<25x10xbf16>, vector<288x10xf32> -> vector<288x10xf32>
    %c3 = arith.constant 3 : index
    %c0_10 = arith.constant 0 : index
    %c0_11 = arith.constant 0 : index
    %10 = vector.load %arg1[%c3, %c0_10, %c0_11] : memref<4x288x25xbf16, #tpu.memory_space<vmem>>, vector<1x288x25xbf16>
    %11 = vector.shape_cast %10 : vector<1x288x25xbf16> to vector<288x25xbf16>
    %cst_12 = arith.constant dense<0.000000e+00> : vector<288x10xf32>
    %12 = tpu.matmul %11, %0, %cst_12 {dimension_numbers = #tpu.dot_dimension_numbers<[1], [0], [0], [1], [0, 0, 1, 1], [], []>} : vector<288x25xbf16>, vector<25x10xbf16>, vector<288x10xf32> -> vector<288x10xf32>
    %13 = arith.maximumf %3, %6 : vector<288x10xf32>
    %14 = arith.maximumf %9, %12 : vector<288x10xf32>
    %15 = arith.maximumf %13, %14 : vector<288x10xf32>
    %c0_13 = arith.constant 0 : index
    %c0_14 = arith.constant 0 : index
    %16 = vector.load %arg3[%c0_13, %c0_14] : memref<1x10xf32, #tpu.memory_space<vmem>>, vector<1x10xf32>
    %17 = vector.broadcast %16 : vector<1x10xf32> to vector<288x10xf32>
    %18 = arith.addf %15, %17 : vector<288x10xf32>
    %cst_15 = arith.constant 0.000000e+00 : f32
    %19 = vector.broadcast %cst_15 : f32 to vector<288x10xf32>
    %20 = arith.maximumf %18, %19 : vector<288x10xf32>
    %21 = arith.truncf %20 : vector<288x10xf32> to vector<288x10xbf16>
    %c0_16 = arith.constant 0 : index
    %c0_17 = arith.constant 0 : index
    %22 = vector.load %arg4[%c0_16, %c0_17] : memref<288x10xbf16, #tpu.memory_space<vmem>>, vector<288x10xbf16>
    tpu.vector_store %arg4[%c0_16, %c0_17], %21 {strides = array<i32>} : memref<288x10xbf16, #tpu.memory_space<vmem>>, vector<288x10xbf16>,
    return
  }
  func.func @transform_0(%arg0: i32) -> (i32, i32, i32) {
    %c0_i32 = arith.constant 0 : i32
    %c0_i32_0 = arith.constant 0 : i32
    %c0_i32_1 = arith.constant 0 : i32
    return %c0_i32, %arg0, %c0_i32_0 : i32, i32, i32
  }
  func.func @transform_1(%arg0: i32) -> (i32, i32) {
    %c0_i32 = arith.constant 0 : i32
    %c0_i32_0 = arith.constant 0 : i32
    %c0_i32_1 = arith.constant 0 : i32
    return %c0_i32, %c0_i32_0 : i32, i32
  }
  func.func @transform_2(%arg0: i32) -> (i32, i32) {
    %c0_i32 = arith.constant 0 : i32
    %c0_i32_0 = arith.constant 0 : i32
    %c0_i32_1 = arith.constant 0 : i32
    return %c0_i32, %c0_i32_0 : i32, i32
  }
  func.func @transform_3(%arg0: i32) -> (i32, i32) {
    %c0_i32 = arith.constant 0 : i32
    %c0_i32_0 = arith.constant 0 : i32
    return %arg0, %c0_i32 : i32, i32
  }
}

module attributes {stable_mosaic.version = 11 : i64} {
  func.func @_head_kernel(%arg0: i32, %arg1: memref<2x320xf32, #tpu.memory_space<vmem>>, %arg2: memref<320x50xf32, #tpu.memory_space<vmem>>, %arg3: memref<1x50xf32, #tpu.memory_space<vmem>>, %arg4: memref<50x10xf32, #tpu.memory_space<vmem>>, %arg5: memref<1x10xf32, #tpu.memory_space<vmem>>, %arg6: memref<2x10xf32, #tpu.memory_space<vmem>>) attributes {dimension_semantics = [#tpu.dimension_semantics<parallel>], iteration_bounds = array<i64: 1>, scalar_prefetch = 0 : i64, scratch_operands = 0 : i64, tpu.core_type = #tpu.core_type<tc>, window_params = [{transform_indices = @transform_0, window_bounds = array<i64: 2, 320>}, {pipeline_mode = #tpu.pipeline_mode<synchronous>, transform_indices = @transform_1, window_bounds = array<i64: 320, 50>}, {pipeline_mode = #tpu.pipeline_mode<synchronous>, transform_indices = @transform_2, window_bounds = array<i64: 1, 50>}, {pipeline_mode = #tpu.pipeline_mode<synchronous>, transform_indices = @transform_3, window_bounds = array<i64: 50, 10>}, {pipeline_mode = #tpu.pipeline_mode<synchronous>, transform_indices = @transform_4, window_bounds = array<i64: 1, 10>}, {transform_indices = @transform_5, window_bounds = array<i64: 2, 10>}]} {
    %c0 = arith.constant 0 : index
    %c0_0 = arith.constant 0 : index
    %0 = vector.load %arg1[%c0, %c0_0] : memref<2x320xf32, #tpu.memory_space<vmem>>, vector<2x320xf32>
    %c0_1 = arith.constant 0 : index
    %c0_2 = arith.constant 0 : index
    %1 = vector.load %arg2[%c0_1, %c0_2] : memref<320x50xf32, #tpu.memory_space<vmem>>, vector<320x50xf32>
    %cst = arith.constant dense<0.000000e+00> : vector<2x50xf32>
    %2 = tpu.matmul %0, %1, %cst {dimension_numbers = #tpu.dot_dimension_numbers<[1], [0], [0], [1], [0, 0, 1, 1], [], []>} : vector<2x320xf32>, vector<320x50xf32>, vector<2x50xf32> -> vector<2x50xf32>
    %c0_3 = arith.constant 0 : index
    %c0_4 = arith.constant 0 : index
    %3 = vector.load %arg3[%c0_3, %c0_4] : memref<1x50xf32, #tpu.memory_space<vmem>>, vector<1x50xf32>
    %4 = vector.broadcast %3 : vector<1x50xf32> to vector<2x50xf32>
    %5 = arith.addf %2, %4 : vector<2x50xf32>
    %cst_5 = arith.constant 0.000000e+00 : f32
    %6 = vector.broadcast %cst_5 : f32 to vector<2x50xf32>
    %7 = arith.maximumf %5, %6 : vector<2x50xf32>
    %c0_6 = arith.constant 0 : index
    %c0_7 = arith.constant 0 : index
    %8 = vector.load %arg4[%c0_6, %c0_7] : memref<50x10xf32, #tpu.memory_space<vmem>>, vector<50x10xf32>
    %cst_8 = arith.constant dense<0.000000e+00> : vector<2x10xf32>
    %9 = tpu.matmul %7, %8, %cst_8 {dimension_numbers = #tpu.dot_dimension_numbers<[1], [0], [0], [1], [0, 0, 1, 1], [], []>} : vector<2x50xf32>, vector<50x10xf32>, vector<2x10xf32> -> vector<2x10xf32>
    %c0_9 = arith.constant 0 : index
    %c0_10 = arith.constant 0 : index
    %10 = vector.load %arg5[%c0_9, %c0_10] : memref<1x10xf32, #tpu.memory_space<vmem>>, vector<1x10xf32>
    %11 = vector.broadcast %10 : vector<1x10xf32> to vector<2x10xf32>
    %12 = arith.addf %9, %11 : vector<2x10xf32>
    %cst_11 = arith.constant dense<0xFF800000> : vector<2xf32>
    %13 = vector.multi_reduction <maximumf>, %12, %cst_11 [1] : vector<2x10xf32> to vector<2xf32>
    %14 = vector.shape_cast %13 : vector<2xf32> to vector<2x1xf32>
    %15 = vector.broadcast %14 : vector<2x1xf32> to vector<2x10xf32>
    %16 = arith.subf %12, %15 : vector<2x10xf32>
    %17 = math.exp %16 : vector<2x10xf32>
    %cst_12 = arith.constant dense<0.000000e+00> : vector<2xf32>
    %18 = vector.multi_reduction <add>, %17, %cst_12 [1] : vector<2x10xf32> to vector<2xf32>
    %19 = vector.shape_cast %18 : vector<2xf32> to vector<2x1xf32>
    %20 = math.log %19 : vector<2x1xf32>
    %21 = vector.broadcast %20 : vector<2x1xf32> to vector<2x10xf32>
    %22 = arith.subf %16, %21 : vector<2x10xf32>
    %c0_13 = arith.constant 0 : index
    %c0_14 = arith.constant 0 : index
    %23 = vector.load %arg6[%c0_13, %c0_14] : memref<2x10xf32, #tpu.memory_space<vmem>>, vector<2x10xf32>
    tpu.vector_store %arg6[%c0_13, %c0_14], %22 {strides = array<i32>} : memref<2x10xf32, #tpu.memory_space<vmem>>, vector<2x10xf32>,
    return
  }
  func.func @transform_0(%arg0: i32) -> (i32, i32) {
    %c0_i32 = arith.constant 0 : i32
    %c0_i32_0 = arith.constant 0 : i32
    return %arg0, %c0_i32 : i32, i32
  }
  func.func @transform_1(%arg0: i32) -> (i32, i32) {
    %c0_i32 = arith.constant 0 : i32
    %c0_i32_0 = arith.constant 0 : i32
    %c0_i32_1 = arith.constant 0 : i32
    return %c0_i32, %c0_i32_0 : i32, i32
  }
  func.func @transform_2(%arg0: i32) -> (i32, i32) {
    %c0_i32 = arith.constant 0 : i32
    %c0_i32_0 = arith.constant 0 : i32
    %c0_i32_1 = arith.constant 0 : i32
    return %c0_i32, %c0_i32_0 : i32, i32
  }
  func.func @transform_3(%arg0: i32) -> (i32, i32) {
    %c0_i32 = arith.constant 0 : i32
    %c0_i32_0 = arith.constant 0 : i32
    %c0_i32_1 = arith.constant 0 : i32
    return %c0_i32, %c0_i32_0 : i32, i32
  }
  func.func @transform_4(%arg0: i32) -> (i32, i32) {
    %c0_i32 = arith.constant 0 : i32
    %c0_i32_0 = arith.constant 0 : i32
    %c0_i32_1 = arith.constant 0 : i32
    return %c0_i32, %c0_i32_0 : i32, i32
  }
  func.func @transform_5(%arg0: i32) -> (i32, i32) {
    %c0_i32 = arith.constant 0 : i32
    %c0_i32_0 = arith.constant 0 : i32
    return %arg0, %c0_i32 : i32, i32
  }
}

module attributes {stable_mosaic.version = 11 : i64} {
  func.func @_conv_pool_relu_kernel(%arg0: i32, %arg1: memref<4x32x250xbf16, #tpu.memory_space<vmem>>, %arg2: memref<250x20xbf16, #tpu.memory_space<vmem>>, %arg3: memref<1x20xf32, #tpu.memory_space<vmem>>, %arg4: memref<32x20xf32, #tpu.memory_space<vmem>>) attributes {dimension_semantics = [#tpu.dimension_semantics<parallel>], iteration_bounds = array<i64: 1>, scalar_prefetch = 0 : i64, scratch_operands = 0 : i64, tpu.core_type = #tpu.core_type<tc>, window_params = [{transform_indices = @transform_0, window_bounds = array<i64: 4, 32, 250>}, {pipeline_mode = #tpu.pipeline_mode<synchronous>, transform_indices = @transform_1, window_bounds = array<i64: 250, 20>}, {pipeline_mode = #tpu.pipeline_mode<synchronous>, transform_indices = @transform_2, window_bounds = array<i64: 1, 20>}, {transform_indices = @transform_3, window_bounds = array<i64: 32, 20>}]} {
    %c0 = arith.constant 0 : index
    %c0_0 = arith.constant 0 : index
    %0 = vector.load %arg2[%c0, %c0_0] : memref<250x20xbf16, #tpu.memory_space<vmem>>, vector<250x20xbf16>
    %c0_1 = arith.constant 0 : index
    %c0_2 = arith.constant 0 : index
    %c0_3 = arith.constant 0 : index
    %1 = vector.load %arg1[%c0_1, %c0_2, %c0_3] : memref<4x32x250xbf16, #tpu.memory_space<vmem>>, vector<1x32x250xbf16>
    %2 = vector.shape_cast %1 : vector<1x32x250xbf16> to vector<32x250xbf16>
    %cst = arith.constant dense<0.000000e+00> : vector<32x20xf32>
    %3 = tpu.matmul %2, %0, %cst {dimension_numbers = #tpu.dot_dimension_numbers<[1], [0], [0], [1], [0, 0, 1, 1], [], []>} : vector<32x250xbf16>, vector<250x20xbf16>, vector<32x20xf32> -> vector<32x20xf32>
    %c1 = arith.constant 1 : index
    %c0_4 = arith.constant 0 : index
    %c0_5 = arith.constant 0 : index
    %4 = vector.load %arg1[%c1, %c0_4, %c0_5] : memref<4x32x250xbf16, #tpu.memory_space<vmem>>, vector<1x32x250xbf16>
    %5 = vector.shape_cast %4 : vector<1x32x250xbf16> to vector<32x250xbf16>
    %cst_6 = arith.constant dense<0.000000e+00> : vector<32x20xf32>
    %6 = tpu.matmul %5, %0, %cst_6 {dimension_numbers = #tpu.dot_dimension_numbers<[1], [0], [0], [1], [0, 0, 1, 1], [], []>} : vector<32x250xbf16>, vector<250x20xbf16>, vector<32x20xf32> -> vector<32x20xf32>
    %c2 = arith.constant 2 : index
    %c0_7 = arith.constant 0 : index
    %c0_8 = arith.constant 0 : index
    %7 = vector.load %arg1[%c2, %c0_7, %c0_8] : memref<4x32x250xbf16, #tpu.memory_space<vmem>>, vector<1x32x250xbf16>
    %8 = vector.shape_cast %7 : vector<1x32x250xbf16> to vector<32x250xbf16>
    %cst_9 = arith.constant dense<0.000000e+00> : vector<32x20xf32>
    %9 = tpu.matmul %8, %0, %cst_9 {dimension_numbers = #tpu.dot_dimension_numbers<[1], [0], [0], [1], [0, 0, 1, 1], [], []>} : vector<32x250xbf16>, vector<250x20xbf16>, vector<32x20xf32> -> vector<32x20xf32>
    %c3 = arith.constant 3 : index
    %c0_10 = arith.constant 0 : index
    %c0_11 = arith.constant 0 : index
    %10 = vector.load %arg1[%c3, %c0_10, %c0_11] : memref<4x32x250xbf16, #tpu.memory_space<vmem>>, vector<1x32x250xbf16>
    %11 = vector.shape_cast %10 : vector<1x32x250xbf16> to vector<32x250xbf16>
    %cst_12 = arith.constant dense<0.000000e+00> : vector<32x20xf32>
    %12 = tpu.matmul %11, %0, %cst_12 {dimension_numbers = #tpu.dot_dimension_numbers<[1], [0], [0], [1], [0, 0, 1, 1], [], []>} : vector<32x250xbf16>, vector<250x20xbf16>, vector<32x20xf32> -> vector<32x20xf32>
    %13 = arith.maximumf %3, %6 : vector<32x20xf32>
    %14 = arith.maximumf %9, %12 : vector<32x20xf32>
    %15 = arith.maximumf %13, %14 : vector<32x20xf32>
    %c0_13 = arith.constant 0 : index
    %c0_14 = arith.constant 0 : index
    %16 = vector.load %arg3[%c0_13, %c0_14] : memref<1x20xf32, #tpu.memory_space<vmem>>, vector<1x20xf32>
    %17 = vector.broadcast %16 : vector<1x20xf32> to vector<32x20xf32>
    %18 = arith.addf %15, %17 : vector<32x20xf32>
    %cst_15 = arith.constant 0.000000e+00 : f32
    %19 = vector.broadcast %cst_15 : f32 to vector<32x20xf32>
    %20 = arith.maximumf %18, %19 : vector<32x20xf32>
    %c0_16 = arith.constant 0 : index
    %c0_17 = arith.constant 0 : index
    %21 = vector.load %arg4[%c0_16, %c0_17] : memref<32x20xf32, #tpu.memory_space<vmem>>, vector<32x20xf32>
    tpu.vector_store %arg4[%c0_16, %c0_17], %20 {strides = array<i32>} : memref<32x20xf32, #tpu.memory_space<vmem>>, vector<32x20xf32>,
    return
  }
  func.func @transform_0(%arg0: i32) -> (i32, i32, i32) {
    %c0_i32 = arith.constant 0 : i32
    %c0_i32_0 = arith.constant 0 : i32
    %c0_i32_1 = arith.constant 0 : i32
    return %c0_i32, %arg0, %c0_i32_0 : i32, i32, i32
  }
  func.func @transform_1(%arg0: i32) -> (i32, i32) {
    %c0_i32 = arith.constant 0 : i32
    %c0_i32_0 = arith.constant 0 : i32
    %c0_i32_1 = arith.constant 0 : i32
    return %c0_i32, %c0_i32_0 : i32, i32
  }
  func.func @transform_2(%arg0: i32) -> (i32, i32) {
    %c0_i32 = arith.constant 0 : i32
    %c0_i32_0 = arith.constant 0 : i32
    %c0_i32_1 = arith.constant 0 : i32
    return %c0_i32, %c0_i32_0 : i32, i32
  }
  func.func @transform_3(%arg0: i32) -> (i32, i32) {
    %c0_i32 = arith.constant 0 : i32
    %c0_i32_0 = arith.constant 0 : i32
    return %arg0, %c0_i32 : i32, i32
  }
}

</mosaic_0001>

<llo_original>
// kernel: mnist_conv_forward.3
$region0: #{mnist_conv_forward.3}
  #allocation0 [shape = 'u32[]', space=smem, size = 0x4, offset = 0x4, fixed_abs, tag = 'smem constant byte address 0x4 - core index']
  #allocation1 [shape = 'u32[72,128]{1,0:T(1,128)}', space=vmem, size = 0x9000, scoped, tag = 'internal scratch']
  %s0 = inlined_call_operand.vmem [shape: bf16[4,288,25], index: 0, kind: input, shape index: {}]
  %s1 = inlined_call_operand.vmem [shape: bf16[25,10], index: 1, kind: input, shape index: {}]
  %s2 = inlined_call_operand.vmem [shape: f32[1,10], index: 2, kind: input, shape index: {}]
  %s3 = inlined_call_operand.vmem [shape: bf16[288,10], index: 3, kind: output, shape index: {}]
  %s4 = sld [smem:[#allocation0]]
  $region22: #{mnist_conv_forward.3} parent=0
    _
  %s6 = ssub.s32 1, %s4
  %s7 = scalar_select 0, %s6, %s4
  // Predicated region
  $region2: #{mnist_conv_forward.3} parent=0 // pred_check
    _
  $region3: #{mnist_conv_forward.3} parent=0 // pred_check_branch
    %9 = sbr.rel (0) target = $region5
  $region4: #{mnist_conv_forward.3} parent=0 // pred_region
    _
  $region5: #{mnist_conv_forward.3} parent=0 // pred_fallthru
    _
  // Predicated region
  $region6: #{mnist_conv_forward.3} parent=0 // pred_check
    _
  $region7: #{mnist_conv_forward.3} parent=0 // pred_check_branch
    %11 = sbr.rel (0) target = $region9
  $region8: #{mnist_conv_forward.3} parent=0 // pred_region
    _
  $region9: #{mnist_conv_forward.3} parent=0 // pred_fallthru
    _
  // Predicated region
  $region10: #{mnist_conv_forward.3} parent=0 // pred_check
    _
  $region11: #{mnist_conv_forward.3} parent=0 // pred_check_branch
    %13 = sbr.rel (0) target = $region13
  $region12: #{mnist_conv_forward.3} parent=0 // pred_region
    _
  $region13: #{mnist_conv_forward.3} parent=0 // pred_fallthru
    _
  %v15 = vld [vmem:[%s1] sm:$0xf]
  %v16 = vld [vmem:[%s1 + $0x4] sm:$0xf]
  %v17 = vld [vmem:[%s1 + $0x8] sm:$0xf]
  %v18 = vld [vmem:[%s1 + $0xc] sm:$0x1]
  %v19 = vld [vmem:[%s0] sm:$0xf]
  %v20 = vld [vmem:[%s0 + $0x4] sm:$0xf]
  %v21 = vld [vmem:[%s0 + $0x8] sm:$0xf]
  %v22 = vld [vmem:[%s0 + $0xc] sm:$0xf]
  %v23 = vld [vmem:[%s0 + $0x10] sm:$0xf]
  %v24 = vld [vmem:[%s0 + $0x14] sm:$0xf]
  %v25 = vld [vmem:[%s0 + $0x18] sm:$0xf]
  %v26 = vld [vmem:[%s0 + $0x1c] sm:$0xf]
  %v27 = vld [vmem:[%s0 + $0x20] sm:$0xf]
  %v28 = vld [vmem:[%s0 + $0x24] sm:$0xf]
  %v29 = vld [vmem:[%s0 + $0x28] sm:$0xf]
  %v30 = vld [vmem:[%s0 + $0x2c] sm:$0xf]
  %v31 = vld [vmem:[%s0 + $0x30] sm:$0xf]
  %v32 = vld [vmem:[%s0 + $0x34] sm:$0xf]
  %v33 = vld [vmem:[%s0 + $0x38] sm:$0xf]
  %v34 = vld [vmem:[%s0 + $0x3c] sm:$0xf]
  %v35 = vld [vmem:[%s0 + $0x40] sm:$0xf]
  %v36 = vld [vmem:[%s0 + $0x44] sm:$0xf]
  %v37 = vld [vmem:[%s0 + $0x48] sm:$0xf]
  %v38 = vld [vmem:[%s0 + $0x4c] sm:$0xf]
  %v39 = vld [vmem:[%s0 + $0x50] sm:$0xf]
  %v40 = vld [vmem:[%s0 + $0x54] sm:$0xf]
  %v41 = vld [vmem:[%s0 + $0x58] sm:$0xf]
  %v42 = vld [vmem:[%s0 + $0x5c] sm:$0xf]
  %v43 = vld [vmem:[%s0 + $0x60] sm:$0xf]
  %v44 = vld [vmem:[%s0 + $0x64] sm:$0xf]
  %v45 = vld [vmem:[%s0 + $0x68] sm:$0xf]
  %v46 = vld [vmem:[%s0 + $0x6c] sm:$0xf]
  %v47 = vld [vmem:[%s0 + $0x70] sm:$0xf]
  %v48 = vld [vmem:[%s0 + $0x74] sm:$0xf]
  %v49 = vld [vmem:[%s0 + $0x78] sm:$0xf]
  %v50 = vld [vmem:[%s0 + $0x7c] sm:$0xf]
  %v51 = vld [vmem:[%s0 + $0x80] sm:$0xf]
  %v52 = vld [vmem:[%s0 + $0x84] sm:$0xf]
  %v53 = vld [vmem:[%s0 + $0x88] sm:$0xf]
  %v54 = vld [vmem:[%s0 + $0x8c] sm:$0xf]
  %v91 = vunpack.c.l.b16 %v19
  %v92 = vunpack.c.l.b16 %v20
  %v93 = vunpack.c.l.b16 %v21
  %v94 = vunpack.c.l.b16 %v22
  %v95 = vunpack.c.l.b16 %v23
  %v96 = vunpack.c.l.b16 %v24
  %v97 = vunpack.c.l.b16 %v25
  %v98 = vunpack.c.l.b16 %v26
  %v99 = vunpack.c.l.b16 %v27
  %v100 = vunpack.c.l.b16 %v28
  %v101 = vunpack.c.l.b16 %v29
  %v102 = vunpack.c.l.b16 %v30
  %v103 = vunpack.c.l.b16 %v31
  %v104 = vunpack.c.l.b16 %v32
  %v105 = vunpack.c.l.b16 %v33
  %v106 = vunpack.c.l.b16 %v34
  %v107 = vunpack.c.l.b16 %v35
  %v108 = vunpack.c.l.b16 %v36
  %v109 = vunpack.c.l.b16 %v37
  %v110 = vunpack.c.l.b16 %v38
  %v111 = vunpack.c.l.b16 %v39
  %v112 = vunpack.c.l.b16 %v40
  %v113 = vunpack.c.l.b16 %v41
  %v114 = vunpack.c.l.b16 %v42
  %v115 = vunpack.c.l.b16 %v43
  %v116 = vunpack.c.l.b16 %v44
  %v117 = vunpack.c.l.b16 %v45
  %v118 = vunpack.c.l.b16 %v46
  %v119 = vunpack.c.l.b16 %v47
  %v120 = vunpack.c.l.b16 %v48
  %v121 = vunpack.c.l.b16 %v49
  %v122 = vunpack.c.l.b16 %v50
  %v123 = vunpack.c.l.b16 %v51
  %v124 = vunpack.c.l.b16 %v52
  %v125 = vunpack.c.l.b16 %v53
  %v126 = vunpack.c.l.b16 %v54
  %v127 = vpack.c.b16 %v92, %v91
  %v128 = vpack.c.b16 %v94, %v93
  %v129 = vpack.c.b16 %v96, %v95
  %v130 = vpack.c.b16 %v98, %v97
  %v131 = vpack.c.b16 %v100, %v99
  %v132 = vpack.c.b16 %v102, %v101
  %v133 = vpack.c.b16 %v104, %v103
  %v134 = vpack.c.b16 %v106, %v105
  %v135 = vpack.c.b16 %v108, %v107
  %v136 = vpack.c.b16 %v110, %v109
  %v137 = vpack.c.b16 %v112, %v111
  %v138 = vpack.c.b16 %v114, %v113
  %v139 = vpack.c.b16 %v116, %v115
  %v140 = vpack.c.b16 %v118, %v117
  %v141 = vpack.c.b16 %v120, %v119
  %v142 = vpack.c.b16 %v122, %v121
  %v143 = vpack.c.b16 %v124, %v123
  %v144 = vpack.c.b16 %v126, %v125
  %v149 = vunpack.c.l.b16 %v15
  %v150 = vunpack.c.l.b16 %v16
  %v151 = vunpack.c.l.b16 %v17
  %v152 = vunpack.c.l.b16 %v18
  %v153 = vpack.c.b16 %v150, %v149
  %v154 = vpack.c.b16 %v152, %v151
  %vm156 = vcmask 203776
  %v158 = vsel %vm156, %v127, 0
  %v161 = vsel %vm156, %v128, 0
  %v164 = vsel %vm156, %v129, 0
  %v167 = vsel %vm156, %v130, 0
  %v170 = vsel %vm156, %v131, 0
  %v173 = vsel %vm156, %v132, 0
  %v176 = vsel %vm156, %v133, 0
  %v179 = vsel %vm156, %v134, 0
  %v182 = vsel %vm156, %v135, 0
  %v185 = vsel %vm156, %v136, 0
  %v188 = vsel %vm156, %v137, 0
  %v191 = vsel %vm156, %v138, 0
  %v194 = vsel %vm156, %v139, 0
  %v197 = vsel %vm156, %v140, 0
  %v200 = vsel %vm156, %v141, 0
  %v203 = vsel %vm156, %v142, 0
  %v206 = vsel %vm156, %v143, 0
  %v209 = vsel %vm156, %v144, 0
  %vm211 = vcmask 1043456
  %vm212 = vcmask 1044480
  %v213 = vsel %vm211, 4294967295, 65535
  %v214 = vsel %vm212, %v213, 0
  %v216 = vand.u32 %v154, %v214
  %218 = vmatpush.bf16.msra.mxu0 0
  %219 = vmatpush.bf16.msra.mxu0 0
  %220 = vmatpush.bf16.msra.mxu0 0
  %221 = vmatpush.bf16.msra.mxu0 0
  %222 = vmatpush.bf16.msra.mxu0 0
  %223 = vmatpush.bf16.msra.mxu0 0
  %224 = vmatpush.bf16.msra.mxu0 %v216
  %225 = vmatpush.bf16.msra.mxu0 %v153
  %226 = vmatmul.bf16.gmra.mxu0 %v158
  %v227 = vpop.f32.mrf.mxu0
  %v228 = vadd.f32 0.0, %v227
  %v229 = vpop.f32.mrf.mxu0
  %v230 = vadd.f32 0.0, %v229
  %231 = vmatmul.bf16.gmra.mxu0 %v161
  %v232 = vpop.f32.mrf.mxu0
  %v233 = vadd.f32 0.0, %v232
  %v234 = vpop.f32.mrf.mxu0
  %v235 = vadd.f32 0.0, %v234
  %236 = vmatmul.bf16.gmra.mxu0 %v164
  %v237 = vpop.f32.mrf.mxu0
  %v238 = vadd.f32 0.0, %v237
  %v239 = vpop.f32.mrf.mxu0
  %v240 = vadd.f32 0.0, %v239
  %241 = vmatmul.bf16.gmra.mxu0 %v167
  %v242 = vpop.f32.mrf.mxu0
  %v243 = vadd.f32 0.0, %v242
  %v244 = vpop.f32.mrf.mxu0
  %v245 = vadd.f32 0.0, %v244
  %246 = vmatmul.bf16.gmra.mxu0 %v170
  %v247 = vpop.f32.mrf.mxu0
  %v248 = vadd.f32 0.0, %v247
  %v249 = vpop.f32.mrf.mxu0
  %v250 = vadd.f32 0.0, %v249
  %251 = vmatmul.bf16.gmra.mxu0 %v173
  %v252 = vpop.f32.mrf.mxu0
  %v253 = vadd.f32 0.0, %v252
  %v254 = vpop.f32.mrf.mxu0
  %v255 = vadd.f32 0.0, %v254
  %256 = vmatmul.bf16.gmra.mxu0 %v176
  %v257 = vpop.f32.mrf.mxu0
  %v258 = vadd.f32 0.0, %v257
  %v259 = vpop.f32.mrf.mxu0
  %v260 = vadd.f32 0.0, %v259
  %261 = vmatmul.bf16.gmra.mxu0 %v179
  %v262 = vpop.f32.mrf.mxu0
  %v263 = vadd.f32 0.0, %v262
  %v264 = vpop.f32.mrf.mxu0
  %v265 = vadd.f32 0.0, %v264
  %266 = vmatmul.bf16.gmra.mxu0 %v182
  %v267 = vpop.f32.mrf.mxu0
  %v268 = vadd.f32 0.0, %v267
  %v269 = vpop.f32.mrf.mxu0
  %v270 = vadd.f32 0.0, %v269
  %271 = vmatmul.bf16.gmra.mxu0 %v185
  %v272 = vpop.f32.mrf.mxu0
  %v273 = vadd.f32 0.0, %v272
  %v274 = vpop.f32.mrf.mxu0
  %v275 = vadd.f32 0.0, %v274
  %276 = vmatmul.bf16.gmra.mxu0 %v188
  %v277 = vpop.f32.mrf.mxu0
  %v278 = vadd.f32 0.0, %v277
  %v279 = vpop.f32.mrf.mxu0
  %v280 = vadd.f32 0.0, %v279
  %281 = vmatmul.bf16.gmra.mxu0 %v191
  %v282 = vpop.f32.mrf.mxu0
  %v283 = vadd.f32 0.0, %v282
  %v284 = vpop.f32.mrf.mxu0
  %v285 = vadd.f32 0.0, %v284
  %286 = vmatmul.bf16.gmra.mxu0 %v194
  %v287 = vpop.f32.mrf.mxu0
  %v288 = vadd.f32 0.0, %v287
  %v289 = vpop.f32.mrf.mxu0
  %v290 = vadd.f32 0.0, %v289
  %291 = vmatmul.bf16.gmra.mxu0 %v197
  %v292 = vpop.f32.mrf.mxu0
  %v293 = vadd.f32 0.0, %v292
  %v294 = vpop.f32.mrf.mxu0
  %v295 = vadd.f32 0.0, %v294
  %296 = vmatmul.bf16.gmra.mxu0 %v200
  %v297 = vpop.f32.mrf.mxu0
  %v298 = vadd.f32 0.0, %v297
  %v299 = vpop.f32.mrf.mxu0
  %v300 = vadd.f32 0.0, %v299
  %301 = vmatmul.bf16.gmra.mxu0 %v203
  %v302 = vpop.f32.mrf.mxu0
  %v303 = vadd.f32 0.0, %v302
  %v304 = vpop.f32.mrf.mxu0
  %v305 = vadd.f32 0.0, %v304
  %306 = vmatmul.bf16.gmra.mxu0 %v206
  %v307 = vpop.f32.mrf.mxu0
  %v308 = vadd.f32 0.0, %v307
  %v309 = vpop.f32.mrf.mxu0
  %v310 = vadd.f32 0.0, %v309
  %311 = vmatmul.bf16.gmra.mxu0 %v209
  %v312 = vpop.f32.mrf.mxu0
  %v313 = vadd.f32 0.0, %v312
  %v314 = vpop.f32.mrf.mxu0
  %v315 = vadd.f32 0.0, %v314
  %316 = vdwg.mxu0
  %s317 = scalar_lea.vmem %s0, 144
  %v318 = vld [vmem:[%s317] sm:$0xf]
  %v319 = vld [vmem:[%s317 + $0x4] sm:$0xf]
  %v320 = vld [vmem:[%s317 + $0x8] sm:$0xf]
  %v321 = vld [vmem:[%s317 + $0xc] sm:$0xf]
  %v322 = vld [vmem:[%s317 + $0x10] sm:$0xf]
  %v323 = vld [vmem:[%s317 + $0x14] sm:$0xf]
  %v324 = vld [vmem:[%s317 + $0x18] sm:$0xf]
  %v325 = vld [vmem:[%s317 + $0x1c] sm:$0xf]
  %v326 = vld [vmem:[%s317 + $0x20] sm:$0xf]
  %v327 = vld [vmem:[%s317 + $0x24] sm:$0xf]
  %v328 = vld [vmem:[%s317 + $0x28] sm:$0xf]
  %v329 = vld [vmem:[%s317 + $0x2c] sm:$0xf]
  %v330 = vld [vmem:[%s317 + $0x30] sm:$0xf]
  %v331 = vld [vmem:[%s317 + $0x34] sm:$0xf]
  %v332 = vld [vmem:[%s317 + $0x38] sm:$0xf]
  %v333 = vld [vmem:[%s317 + $0x3c] sm:$0xf]
  %v334 = vld [vmem:[%s317 + $0x40] sm:$0xf]
  %v335 = vld [vmem:[%s317 + $0x44] sm:$0xf]
  %v336 = vld [vmem:[%s317 + $0x48] sm:$0xf]
  %v337 = vld [vmem:[%s317 + $0x4c] sm:$0xf]
  %v338 = vld [vmem:[%s317 + $0x50] sm:$0xf]
  %v339 = vld [vmem:[%s317 + $0x54] sm:$0xf]
  %v340 = vld [vmem:[%s317 + $0x58] sm:$0xf]
  %v341 = vld [vmem:[%s317 + $0x5c] sm:$0xf]
  %v342 = vld [vmem:[%s317 + $0x60] sm:$0xf]
  %v343 = vld [vmem:[%s317 + $0x64] sm:$0xf]
  %v344 = vld [vmem:[%s317 + $0x68] sm:$0xf]
  %v345 = vld [vmem:[%s317 + $0x6c] sm:$0xf]
  %v346 = vld [vmem:[%s317 + $0x70] sm:$0xf]
  %v347 = vld [vmem:[%s317 + $0x74] sm:$0xf]
  %v348 = vld [vmem:[%s317 + $0x78] sm:$0xf]
  %v349 = vld [vmem:[%s317 + $0x7c] sm:$0xf]
  %v350 = vld [vmem:[%s317 + $0x80] sm:$0xf]
  %v351 = vld [vmem:[%s317 + $0x84] sm:$0xf]
  %v352 = vld [vmem:[%s317 + $0x88] sm:$0xf]
  %v353 = vld [vmem:[%s317 + $0x8c] sm:$0xf]
  %v390 = vunpack.c.l.b16 %v318
  %v391 = vunpack.c.l.b16 %v319
  %v392 = vunpack.c.l.b16 %v320
  %v393 = vunpack.c.l.b16 %v321
  %v394 = vunpack.c.l.b16 %v322
  %v395 = vunpack.c.l.b16 %v323
  %v396 = vunpack.c.l.b16 %v324
  %v397 = vunpack.c.l.b16 %v325
  %v398 = vunpack.c.l.b16 %v326
  %v399 = vunpack.c.l.b16 %v327
  %v400 = vunpack.c.l.b16 %v328
  %v401 = vunpack.c.l.b16 %v329
  %v402 = vunpack.c.l.b16 %v330
  %v403 = vunpack.c.l.b16 %v331
  %v404 = vunpack.c.l.b16 %v332
  %v405 = vunpack.c.l.b16 %v333
  %v406 = vunpack.c.l.b16 %v334
  %v407 = vunpack.c.l.b16 %v335
  %v408 = vunpack.c.l.b16 %v336
  %v409 = vunpack.c.l.b16 %v337
  %v410 = vunpack.c.l.b16 %v338
  %v411 = vunpack.c.l.b16 %v339
  %v412 = vunpack.c.l.b16 %v340
  %v413 = vunpack.c.l.b16 %v341
  %v414 = vunpack.c.l.b16 %v342
  %v415 = vunpack.c.l.b16 %v343
  %v416 = vunpack.c.l.b16 %v344
  %v417 = vunpack.c.l.b16 %v345
  %v418 = vunpack.c.l.b16 %v346
  %v419 = vunpack.c.l.b16 %v347
  %v420 = vunpack.c.l.b16 %v348
  %v421 = vunpack.c.l.b16 %v349
  %v422 = vunpack.c.l.b16 %v350
  %v423 = vunpack.c.l.b16 %v351
  %v424 = vunpack.c.l.b16 %v352
  %v425 = vunpack.c.l.b16 %v353
  %v426 = vpack.c.b16 %v391, %v390
  %v427 = vpack.c.b16 %v393, %v392
  %v428 = vpack.c.b16 %v395, %v394
  %v429 = vpack.c.b16 %v397, %v396
  %v430 = vpack.c.b16 %v399, %v398
  %v431 = vpack.c.b16 %v401, %v400
  %v432 = vpack.c.b16 %v403, %v402
  %v433 = vpack.c.b16 %v405, %v404
  %v434 = vpack.c.b16 %v407, %v406
  %v435 = vpack.c.b16 %v409, %v408
  %v436 = vpack.c.b16 %v411, %v410
  %v437 = vpack.c.b16 %v413, %v412
  %v438 = vpack.c.b16 %v415, %v414
  %v439 = vpack.c.b16 %v417, %v416
  %v440 = vpack.c.b16 %v419, %v418
  %v441 = vpack.c.b16 %v421, %v420
  %v442 = vpack.c.b16 %v423, %v422
  %v443 = vpack.c.b16 %v425, %v424
  %v445 = vsel %vm156, %v426, 0
  %v448 = vsel %vm156, %v427, 0
  %v451 = vsel %vm156, %v428, 0
  %v454 = vsel %vm156, %v429, 0
  %v457 = vsel %vm156, %v430, 0
  %v460 = vsel %vm156, %v431, 0
  %v463 = vsel %vm156, %v432, 0
  %v466 = vsel %vm156, %v433, 0
  %v469 = vsel %vm156, %v434, 0
  %v472 = vsel %vm156, %v435, 0
  %v475 = vsel %vm156, %v436, 0
  %v478 = vsel %vm156, %v437, 0
  %v481 = vsel %vm156, %v438, 0
  %v484 = vsel %vm156, %v439, 0
  %v487 = vsel %vm156, %v440, 0
  %v490 = vsel %vm156, %v441, 0
  %v493 = vsel %vm156, %v442, 0
  %v496 = vsel %vm156, %v443, 0
  %498 = vmatpush.bf16.msra.mxu0 0
  %499 = vmatpush.bf16.msra.mxu0 0
  %500 = vmatpush.bf16.msra.mxu0 0
  %501 = vmatpush.bf16.msra.mxu0 0
  %502 = vmatpush.bf16.msra.mxu0 0
  %503 = vmatpush.bf16.msra.mxu0 0
  %504 = vmatpush.bf16.msra.mxu0 %v216
  %505 = vmatpush.bf16.msra.mxu0 %v153
  %506 = vmatmul.bf16.gmra.mxu0 %v445
  %v507 = vpop.f32.mrf.mxu0
  %v508 = vadd.f32 0.0, %v507
  %v509 = vpop.f32.mrf.mxu0
  %v510 = vadd.f32 0.0, %v509
  %511 = vmatmul.bf16.gmra.mxu0 %v448
  %v512 = vpop.f32.mrf.mxu0
  %v513 = vadd.f32 0.0, %v512
  %v514 = vpop.f32.mrf.mxu0
  %v515 = vadd.f32 0.0, %v514
  %516 = vmatmul.bf16.gmra.mxu0 %v451
  %v517 = vpop.f32.mrf.mxu0
  %v518 = vadd.f32 0.0, %v517
  %v519 = vpop.f32.mrf.mxu0
  %v520 = vadd.f32 0.0, %v519
  %521 = vmatmul.bf16.gmra.mxu0 %v454
  %v522 = vpop.f32.mrf.mxu0
  %v523 = vadd.f32 0.0, %v522
  %v524 = vpop.f32.mrf.mxu0
  %v525 = vadd.f32 0.0, %v524
  %526 = vmatmul.bf16.gmra.mxu0 %v457
  %v527 = vpop.f32.mrf.mxu0
  %v528 = vadd.f32 0.0, %v527
  %v529 = vpop.f32.mrf.mxu0
  %v530 = vadd.f32 0.0, %v529
  %531 = vmatmul.bf16.gmra.mxu0 %v460
  %v532 = vpop.f32.mrf.mxu0
  %v533 = vadd.f32 0.0, %v532
  %v534 = vpop.f32.mrf.mxu0
  %v535 = vadd.f32 0.0, %v534
  %536 = vmatmul.bf16.gmra.mxu0 %v463
  %v537 = vpop.f32.mrf.mxu0
  %v538 = vadd.f32 0.0, %v537
  %v539 = vpop.f32.mrf.mxu0
  %v540 = vadd.f32 0.0, %v539
  %541 = vmatmul.bf16.gmra.mxu0 %v466
  %v542 = vpop.f32.mrf.mxu0
  %v543 = vadd.f32 0.0, %v542
  %v544 = vpop.f32.mrf.mxu0
  %v545 = vadd.f32 0.0, %v544
  %546 = vmatmul.bf16.gmra.mxu0 %v469
  %v547 = vpop.f32.mrf.mxu0
  %v548 = vadd.f32 0.0, %v547
  %v549 = vpop.f32.mrf.mxu0
  %v550 = vadd.f32 0.0, %v549
  %551 = vmatmul.bf16.gmra.mxu0 %v472
  %v552 = vpop.f32.mrf.mxu0
  %v553 = vadd.f32 0.0, %v552
  %v554 = vpop.f32.mrf.mxu0
  %v555 = vadd.f32 0.0, %v554
  %556 = vmatmul.bf16.gmra.mxu0 %v475
  %v557 = vpop.f32.mrf.mxu0
  %v558 = vadd.f32 0.0, %v557
  %v559 = vpop.f32.mrf.mxu0
  %v560 = vadd.f32 0.0, %v559
  %561 = vmatmul.bf16.gmra.mxu0 %v478
  %v562 = vpop.f32.mrf.mxu0
  %v563 = vadd.f32 0.0, %v562
  %v564 = vpop.f32.mrf.mxu0
  %v565 = vadd.f32 0.0, %v564
  %566 = vmatmul.bf16.gmra.mxu0 %v481
  %v567 = vpop.f32.mrf.mxu0
  %v568 = vadd.f32 0.0, %v567
  %v569 = vpop.f32.mrf.mxu0
  %v570 = vadd.f32 0.0, %v569
  %571 = vmatmul.bf16.gmra.mxu0 %v484
  %v572 = vpop.f32.mrf.mxu0
  %v573 = vadd.f32 0.0, %v572
  %v574 = vpop.f32.mrf.mxu0
  %v575 = vadd.f32 0.0, %v574
  %576 = vmatmul.bf16.gmra.mxu0 %v487
  %v577 = vpop.f32.mrf.mxu0
  %v578 = vadd.f32 0.0, %v577
  %v579 = vpop.f32.mrf.mxu0
  %v580 = vadd.f32 0.0, %v579
  %581 = vmatmul.bf16.gmra.mxu0 %v490
  %v582 = vpop.f32.mrf.mxu0
  %v583 = vadd.f32 0.0, %v582
  %v584 = vpop.f32.mrf.mxu0
  %v585 = vadd.f32 0.0, %v584
  %586 = vmatmul.bf16.gmra.mxu0 %v493
  %v587 = vpop.f32.mrf.mxu0
  %v588 = vadd.f32 0.0, %v587
  %v589 = vpop.f32.mrf.mxu0
  %v590 = vadd.f32 0.0, %v589
  %591 = vmatmul.bf16.gmra.mxu0 %v496
  %v592 = vpop.f32.mrf.mxu0
  %v593 = vadd.f32 0.0, %v592
  %v594 = vpop.f32.mrf.mxu0
  %v595 = vadd.f32 0.0, %v594
  %596 = vdwg.mxu0
  %s597 = scalar_lea.vmem %s0, 288
  %v598 = vld [vmem:[%s597] sm:$0xf]
  %v599 = vld [vmem:[%s597 + $0x4] sm:$0xf]
  %v600 = vld [vmem:[%s597 + $0x8] sm:$0xf]
  %v601 = vld [vmem:[%s597 + $0xc] sm:$0xf]
  %v602 = vld [vmem:[%s597 + $0x10] sm:$0xf]
  %v603 = vld [vmem:[%s597 + $0x14] sm:$0xf]
  %v604 = vld [vmem:[%s597 + $0x18] sm:$0xf]
  %v605 = vld [vmem:[%s597 + $0x1c] sm:$0xf]
  %v606 = vld [vmem:[%s597 + $0x20] sm:$0xf]
  %v607 = vld [vmem:[%s597 + $0x24] sm:$0xf]
  %v608 = vld [vmem:[%s597 + $0x28] sm:$0xf]
  %v609 = vld [vmem:[%s597 + $0x2c] sm:$0xf]
  %v610 = vld [vmem:[%s597 + $0x30] sm:$0xf]
  %v611 = vld [vmem:[%s597 + $0x34] sm:$0xf]
  %v612 = vld [vmem:[%s597 + $0x38] sm:$0xf]
  %v613 = vld [vmem:[%s597 + $0x3c] sm:$0xf]
  %v614 = vld [vmem:[%s597 + $0x40] sm:$0xf]
  %v615 = vld [vmem:[%s597 + $0x44] sm:$0xf]
  %v616 = vld [vmem:[%s597 + $0x48] sm:$0xf]
  %v617 = vld [vmem:[%s597 + $0x4c] sm:$0xf]
  %v618 = vld [vmem:[%s597 + $0x50] sm:$0xf]
  %v619 = vld [vmem:[%s597 + $0x54] sm:$0xf]
  %v620 = vld [vmem:[%s597 + $0x58] sm:$0xf]
  %v621 = vld [vmem:[%s597 + $0x5c] sm:$0xf]
  %v622 = vld [vmem:[%s597 + $0x60] sm:$0xf]
  %v623 = vld [vmem:[%s597 + $0x64] sm:$0xf]
  %v624 = vld [vmem:[%s597 + $0x68] sm:$0xf]
  %v625 = vld [vmem:[%s597 + $0x6c] sm:$0xf]
  %v626 = vld [vmem:[%s597 + $0x70] sm:$0xf]
  %v627 = vld [vmem:[%s597 + $0x74] sm:$0xf]
  %v628 = vld [vmem:[%s597 + $0x78] sm:$0xf]
  %v629 = vld [vmem:[%s597 + $0x7c] sm:$0xf]
  %v630 = vld [vmem:[%s597 + $0x80] sm:$0xf]
  %v631 = vld [vmem:[%s597 + $0x84] sm:$0xf]
  %v632 = vld [vmem:[%s597 + $0x88] sm:$0xf]
  %v633 = vld [vmem:[%s597 + $0x8c] sm:$0xf]
  %v670 = vunpack.c.l.b16 %v598
  %v671 = vunpack.c.l.b16 %v599
  %v672 = vunpack.c.l.b16 %v600
  %v673 = vunpack.c.l.b16 %v601
  %v674 = vunpack.c.l.b16 %v602
  %v675 = vunpack.c.l.b16 %v603
  %v676 = vunpack.c.l.b16 %v604
  %v677 = vunpack.c.l.b16 %v605
  %v678 = vunpack.c.l.b16 %v606
  %v679 = vunpack.c.l.b16 %v607
  %v680 = vunpack.c.l.b16 %v608
  %v681 = vunpack.c.l.b16 %v609
  %v682 = vunpack.c.l.b16 %v610
  %v683 = vunpack.c.l.b16 %v611
  %v684 = vunpack.c.l.b16 %v612
  %v685 = vunpack.c.l.b16 %v613
  %v686 = vunpack.c.l.b16 %v614
  %v687 = vunpack.c.l.b16 %v615
  %v688 = vunpack.c.l.b16 %v616
  %v689 = vunpack.c.l.b16 %v617
  %v690 = vunpack.c.l.b16 %v618
  %v691 = vunpack.c.l.b16 %v619
  %v692 = vunpack.c.l.b16 %v620
  %v693 = vunpack.c.l.b16 %v621
  %v694 = vunpack.c.l.b16 %v622
  %v695 = vunpack.c.l.b16 %v623
  %v696 = vunpack.c.l.b16 %v624
  %v697 = vunpack.c.l.b16 %v625
  %v698 = vunpack.c.l.b16 %v626
  %v699 = vunpack.c.l.b16 %v627
  %v700 = vunpack.c.l.b16 %v628
  %v701 = vunpack.c.l.b16 %v629
  %v702 = vunpack.c.l.b16 %v630
  %v703 = vunpack.c.l.b16 %v631
  %v704 = vunpack.c.l.b16 %v632
  %v705 = vunpack.c.l.b16 %v633
  %v706 = vpack.c.b16 %v671, %v670
  %v707 = vpack.c.b16 %v673, %v672
  %v708 = vpack.c.b16 %v675, %v674
  %v709 = vpack.c.b16 %v677, %v676
  %v710 = vpack.c.b16 %v679, %v678
  %v711 = vpack.c.b16 %v681, %v680
  %v712 = vpack.c.b16 %v683, %v682
  %v713 = vpack.c.b16 %v685, %v684
  %v714 = vpack.c.b16 %v687, %v686
  %v715 = vpack.c.b16 %v689, %v688
  %v716 = vpack.c.b16 %v691, %v690
  %v717 = vpack.c.b16 %v693, %v692
  %v718 = vpack.c.b16 %v695, %v694
  %v719 = vpack.c.b16 %v697, %v696
  %v720 = vpack.c.b16 %v699, %v698
  %v721 = vpack.c.b16 %v701, %v700
  %v722 = vpack.c.b16 %v703, %v702
  %v723 = vpack.c.b16 %v705, %v704
  %v725 = vsel %vm156, %v706, 0
  %v728 = vsel %vm156, %v707, 0
  %v731 = vsel %vm156, %v708, 0
  %v734 = vsel %vm156, %v709, 0
  %v737 = vsel %vm156, %v710, 0
  %v740 = vsel %vm156, %v711, 0
  %v743 = vsel %vm156, %v712, 0
  %v746 = vsel %vm156, %v713, 0
  %v749 = vsel %vm156, %v714, 0
  %v752 = vsel %vm156, %v715, 0
  %v755 = vsel %vm156, %v716, 0
  %v758 = vsel %vm156, %v717, 0
  %v761 = vsel %vm156, %v718, 0
  %v764 = vsel %vm156, %v719, 0
  %v767 = vsel %vm156, %v720, 0
  %v770 = vsel %vm156, %v721, 0
  %v773 = vsel %vm156, %v722, 0
  %v776 = vsel %vm156, %v723, 0
  %778 = vmatpush.bf16.msra.mxu0 0
  %779 = vmatpush.bf16.msra.mxu0 0
  %780 = vmatpush.bf16.msra.mxu0 0
  %781 = vmatpush.bf16.msra.mxu0 0
  %782 = vmatpush.bf16.msra.mxu0 0
  %783 = vmatpush.bf16.msra.mxu0 0
  %784 = vmatpush.bf16.msra.mxu0 %v216
  %785 = vmatpush.bf16.msra.mxu0 %v153
  %786 = vmatmul.bf16.gmra.mxu0 %v725
  %v787 = vpop.f32.mrf.mxu0
  %v788 = vadd.f32 0.0, %v787
  %v789 = vpop.f32.mrf.mxu0
  %v790 = vadd.f32 0.0, %v789
  %791 = vmatmul.bf16.gmra.mxu0 %v728
  %v792 = vpop.f32.mrf.mxu0
  %v793 = vadd.f32 0.0, %v792
  %v794 = vpop.f32.mrf.mxu0
  %v795 = vadd.f32 0.0, %v794
  %796 = vmatmul.bf16.gmra.mxu0 %v731
  %v797 = vpop.f32.mrf.mxu0
  %v798 = vadd.f32 0.0, %v797
  %v799 = vpop.f32.mrf.mxu0
  %v800 = vadd.f32 0.0, %v799
  %801 = vmatmul.bf16.gmra.mxu0 %v734
  %v802 = vpop.f32.mrf.mxu0
  %v803 = vadd.f32 0.0, %v802
  %v804 = vpop.f32.mrf.mxu0
  %v805 = vadd.f32 0.0, %v804
  %806 = vmatmul.bf16.gmra.mxu0 %v737
  %v807 = vpop.f32.mrf.mxu0
  %v808 = vadd.f32 0.0, %v807
  %v809 = vpop.f32.mrf.mxu0
  %v810 = vadd.f32 0.0, %v809
  %811 = vmatmul.bf16.gmra.mxu0 %v740
  %v812 = vpop.f32.mrf.mxu0
  %v813 = vadd.f32 0.0, %v812
  %v814 = vpop.f32.mrf.mxu0
  %v815 = vadd.f32 0.0, %v814
  %816 = vmatmul.bf16.gmra.mxu0 %v743
  %v817 = vpop.f32.mrf.mxu0
  %v818 = vadd.f32 0.0, %v817
  %v819 = vpop.f32.mrf.mxu0
  %v820 = vadd.f32 0.0, %v819
  %821 = vmatmul.bf16.gmra.mxu0 %v746
  %v822 = vpop.f32.mrf.mxu0
  %v823 = vadd.f32 0.0, %v822
  %v824 = vpop.f32.mrf.mxu0
  %v825 = vadd.f32 0.0, %v824
  %826 = vmatmul.bf16.gmra.mxu0 %v749
  %v827 = vpop.f32.mrf.mxu0
  %v828 = vadd.f32 0.0, %v827
  %v829 = vpop.f32.mrf.mxu0
  %v830 = vadd.f32 0.0, %v829
  %831 = vmatmul.bf16.gmra.mxu0 %v752
  %v832 = vpop.f32.mrf.mxu0
  %v833 = vadd.f32 0.0, %v832
  %v834 = vpop.f32.mrf.mxu0
  %v835 = vadd.f32 0.0, %v834
  %836 = vmatmul.bf16.gmra.mxu0 %v755
  %v837 = vpop.f32.mrf.mxu0
  %v838 = vadd.f32 0.0, %v837
  %v839 = vpop.f32.mrf.mxu0
  %v840 = vadd.f32 0.0, %v839
  %841 = vmatmul.bf16.gmra.mxu0 %v758
  %v842 = vpop.f32.mrf.mxu0
  %v843 = vadd.f32 0.0, %v842
  %v844 = vpop.f32.mrf.mxu0
  %v845 = vadd.f32 0.0, %v844
  %846 = vmatmul.bf16.gmra.mxu0 %v761
  %v847 = vpop.f32.mrf.mxu0
  %v848 = vadd.f32 0.0, %v847
  %v849 = vpop.f32.mrf.mxu0
  %v850 = vadd.f32 0.0, %v849
  %851 = vmatmul.bf16.gmra.mxu0 %v764
  %v852 = vpop.f32.mrf.mxu0
  %v853 = vadd.f32 0.0, %v852
  %v854 = vpop.f32.mrf.mxu0
  %v855 = vadd.f32 0.0, %v854
  %856 = vmatmul.bf16.gmra.mxu0 %v767
  %v857 = vpop.f32.mrf.mxu0
  %v858 = vadd.f32 0.0, %v857
  %v859 = vpop.f32.mrf.mxu0
  %v860 = vadd.f32 0.0, %v859
  %861 = vmatmul.bf16.gmra.mxu0 %v770
  %v862 = vpop.f32.mrf.mxu0
  %v863 = vadd.f32 0.0, %v862
  %v864 = vpop.f32.mrf.mxu0
  %v865 = vadd.f32 0.0, %v864
  %866 = vmatmul.bf16.gmra.mxu0 %v773
  %v867 = vpop.f32.mrf.mxu0
  %v868 = vadd.f32 0.0, %v867
  %v869 = vpop.f32.mrf.mxu0
  %v870 = vadd.f32 0.0, %v869
  %871 = vmatmul.bf16.gmra.mxu0 %v776
  %v872 = vpop.f32.mrf.mxu0
  %v873 = vadd.f32 0.0, %v872
  %v874 = vpop.f32.mrf.mxu0
  %v875 = vadd.f32 0.0, %v874
  %876 = vdwg.mxu0
  %s877 = scalar_lea.vmem %s0, 432
  %v878 = vld [vmem:[%s877] sm:$0xf]
  %v879 = vld [vmem:[%s877 + $0x4] sm:$0xf]
  %v880 = vld [vmem:[%s877 + $0x8] sm:$0xf]
  %v881 = vld [vmem:[%s877 + $0xc] sm:$0xf]
  %v882 = vld [vmem:[%s877 + $0x10] sm:$0xf]
  %v883 = vld [vmem:[%s877 + $0x14] sm:$0xf]
  %v884 = vld [vmem:[%s877 + $0x18] sm:$0xf]
  %v885 = vld [vmem:[%s877 + $0x1c] sm:$0xf]
  %v886 = vld [vmem:[%s877 + $0x20] sm:$0xf]
  %v887 = vld [vmem:[%s877 + $0x24] sm:$0xf]
  %v888 = vld [vmem:[%s877 + $0x28] sm:$0xf]
  %v889 = vld [vmem:[%s877 + $0x2c] sm:$0xf]
  %v890 = vld [vmem:[%s877 + $0x30] sm:$0xf]
  %v891 = vld [vmem:[%s877 + $0x34] sm:$0xf]
  %v892 = vld [vmem:[%s877 + $0x38] sm:$0xf]
  %v893 = vld [vmem:[%s877 + $0x3c] sm:$0xf]
  %v894 = vld [vmem:[%s877 + $0x40] sm:$0xf]
  %v895 = vld [vmem:[%s877 + $0x44] sm:$0xf]
  %v896 = vld [vmem:[%s877 + $0x48] sm:$0xf]
  %v897 = vld [vmem:[%s877 + $0x4c] sm:$0xf]
  %v898 = vld [vmem:[%s877 + $0x50] sm:$0xf]
  %v899 = vld [vmem:[%s877 + $0x54] sm:$0xf]
  %v900 = vld [vmem:[%s877 + $0x58] sm:$0xf]
  %v901 = vld [vmem:[%s877 + $0x5c] sm:$0xf]
  %v902 = vld [vmem:[%s877 + $0x60] sm:$0xf]
  %v903 = vld [vmem:[%s877 + $0x64] sm:$0xf]
  %v904 = vld [vmem:[%s877 + $0x68] sm:$0xf]
  %v905 = vld [vmem:[%s877 + $0x6c] sm:$0xf]
  %v906 = vld [vmem:[%s877 + $0x70] sm:$0xf]
  %v907 = vld [vmem:[%s877 + $0x74] sm:$0xf]
  %v908 = vld [vmem:[%s877 + $0x78] sm:$0xf]
  %v909 = vld [vmem:[%s877 + $0x7c] sm:$0xf]
  %v910 = vld [vmem:[%s877 + $0x80] sm:$0xf]
  %v911 = vld [vmem:[%s877 + $0x84] sm:$0xf]
  %v912 = vld [vmem:[%s877 + $0x88] sm:$0xf]
  %v913 = vld [vmem:[%s877 + $0x8c] sm:$0xf]
  %v950 = vunpack.c.l.b16 %v878
  %v951 = vunpack.c.l.b16 %v879
  %v952 = vunpack.c.l.b16 %v880
  %v953 = vunpack.c.l.b16 %v881
  %v954 = vunpack.c.l.b16 %v882
  %v955 = vunpack.c.l.b16 %v883
  %v956 = vunpack.c.l.b16 %v884
  %v957 = vunpack.c.l.b16 %v885
  %v958 = vunpack.c.l.b16 %v886
  %v959 = vunpack.c.l.b16 %v887
  %v960 = vunpack.c.l.b16 %v888
  %v961 = vunpack.c.l.b16 %v889
  %v962 = vunpack.c.l.b16 %v890
  %v963 = vunpack.c.l.b16 %v891
  %v964 = vunpack.c.l.b16 %v892
  %v965 = vunpack.c.l.b16 %v893
  %v966 = vunpack.c.l.b16 %v894
  %v967 = vunpack.c.l.b16 %v895
  %v968 = vunpack.c.l.b16 %v896
  %v969 = vunpack.c.l.b16 %v897
  %v970 = vunpack.c.l.b16 %v898
  %v971 = vunpack.c.l.b16 %v899
  %v972 = vunpack.c.l.b16 %v900
  %v973 = vunpack.c.l.b16 %v901
  %v974 = vunpack.c.l.b16 %v902
  %v975 = vunpack.c.l.b16 %v903
  %v976 = vunpack.c.l.b16 %v904
  %v977 = vunpack.c.l.b16 %v905
  %v978 = vunpack.c.l.b16 %v906
  %v979 = vunpack.c.l.b16 %v907
  %v980 = vunpack.c.l.b16 %v908
  %v981 = vunpack.c.l.b16 %v909
  %v982 = vunpack.c.l.b16 %v910
  %v983 = vunpack.c.l.b16 %v911
  %v984 = vunpack.c.l.b16 %v912
  %v985 = vunpack.c.l.b16 %v913
  %v986 = vpack.c.b16 %v951, %v950
  %v987 = vpack.c.b16 %v953, %v952
  %v988 = vpack.c.b16 %v955, %v954
  %v989 = vpack.c.b16 %v957, %v956
  %v990 = vpack.c.b16 %v959, %v958
  %v991 = vpack.c.b16 %v961, %v960
  %v992 = vpack.c.b16 %v963, %v962
  %v993 = vpack.c.b16 %v965, %v964
  %v994 = vpack.c.b16 %v967, %v966
  %v995 = vpack.c.b16 %v969, %v968
  %v996 = vpack.c.b16 %v971, %v970
  %v997 = vpack.c.b16 %v973, %v972
  %v998 = vpack.c.b16 %v975, %v974
  %v999 = vpack.c.b16 %v977, %v976
  %v1000 = vpack.c.b16 %v979, %v978
  %v1001 = vpack.c.b16 %v981, %v980
  %v1002 = vpack.c.b16 %v983, %v982
  %v1003 = vpack.c.b16 %v985, %v984
  %v1005 = vsel %vm156, %v986, 0
  %v1008 = vsel %vm156, %v987, 0
  %v1011 = vsel %vm156, %v988, 0
  %v1014 = vsel %vm156, %v989, 0
  %v1017 = vsel %vm156, %v990, 0
  %v1020 = vsel %vm156, %v991, 0
  %v1023 = vsel %vm156, %v992, 0
  %v1026 = vsel %vm156, %v993, 0
  %v1029 = vsel %vm156, %v994, 0
  %v1032 = vsel %vm156, %v995, 0
  %v1035 = vsel %vm156, %v996, 0
  %v1038 = vsel %vm156, %v997, 0
  %v1041 = vsel %vm156, %v998, 0
  %v1044 = vsel %vm156, %v999, 0
  %v1047 = vsel %vm156, %v1000, 0
  %v1050 = vsel %vm156, %v1001, 0
  %v1053 = vsel %vm156, %v1002, 0
  %v1056 = vsel %vm156, %v1003, 0
  %1058 = vmatpush.bf16.msra.mxu0 0
  %1059 = vmatpush.bf16.msra.mxu0 0
  %1060 = vmatpush.bf16.msra.mxu0 0
  %1061 = vmatpush.bf16.msra.mxu0 0
  %1062 = vmatpush.bf16.msra.mxu0 0
  %1063 = vmatpush.bf16.msra.mxu0 0
  %1064 = vmatpush.bf16.msra.mxu0 %v216
  %1065 = vmatpush.bf16.msra.mxu0 %v153
  %1066 = vmatmul.bf16.gmra.mxu0 %v1005
  %v1067 = vpop.f32.mrf.mxu0
  %v1068 = vadd.f32 0.0, %v1067
  %v1069 = vpop.f32.mrf.mxu0
  %v1070 = vadd.f32 0.0, %v1069
  %1071 = vmatmul.bf16.gmra.mxu0 %v1008
  %v1072 = vpop.f32.mrf.mxu0
  %v1073 = vadd.f32 0.0, %v1072
  %v1074 = vpop.f32.mrf.mxu0
  %v1075 = vadd.f32 0.0, %v1074
  %1076 = vmatmul.bf16.gmra.mxu0 %v1011
  %v1077 = vpop.f32.mrf.mxu0
  %v1078 = vadd.f32 0.0, %v1077
  %v1079 = vpop.f32.mrf.mxu0
  %v1080 = vadd.f32 0.0, %v1079
  %1081 = vmatmul.bf16.gmra.mxu0 %v1014
  %v1082 = vpop.f32.mrf.mxu0
  %v1083 = vadd.f32 0.0, %v1082
  %v1084 = vpop.f32.mrf.mxu0
  %v1085 = vadd.f32 0.0, %v1084
  %1086 = vmatmul.bf16.gmra.mxu0 %v1017
  %v1087 = vpop.f32.mrf.mxu0
  %v1088 = vadd.f32 0.0, %v1087
  %v1089 = vpop.f32.mrf.mxu0
  %v1090 = vadd.f32 0.0, %v1089
  %1091 = vmatmul.bf16.gmra.mxu0 %v1020
  %v1092 = vpop.f32.mrf.mxu0
  %v1093 = vadd.f32 0.0, %v1092
  %v1094 = vpop.f32.mrf.mxu0
  %v1095 = vadd.f32 0.0, %v1094
  %1096 = vmatmul.bf16.gmra.mxu0 %v1023
  %v1097 = vpop.f32.mrf.mxu0
  %v1098 = vadd.f32 0.0, %v1097
  %v1099 = vpop.f32.mrf.mxu0
  %v1100 = vadd.f32 0.0, %v1099
  %1101 = vmatmul.bf16.gmra.mxu0 %v1026
  %v1102 = vpop.f32.mrf.mxu0
  %v1103 = vadd.f32 0.0, %v1102
  %v1104 = vpop.f32.mrf.mxu0
  %v1105 = vadd.f32 0.0, %v1104
  %1106 = vmatmul.bf16.gmra.mxu0 %v1029
  %v1107 = vpop.f32.mrf.mxu0
  %v1108 = vadd.f32 0.0, %v1107
  %v1109 = vpop.f32.mrf.mxu0
  %v1110 = vadd.f32 0.0, %v1109
  %1111 = vmatmul.bf16.gmra.mxu0 %v1032
  %v1112 = vpop.f32.mrf.mxu0
  %v1113 = vadd.f32 0.0, %v1112
  %v1114 = vpop.f32.mrf.mxu0
  %v1115 = vadd.f32 0.0, %v1114
  %1116 = vmatmul.bf16.gmra.mxu0 %v1035
  %v1117 = vpop.f32.mrf.mxu0
  %v1118 = vadd.f32 0.0, %v1117
  %v1119 = vpop.f32.mrf.mxu0
  %v1120 = vadd.f32 0.0, %v1119
  %1121 = vmatmul.bf16.gmra.mxu0 %v1038
  %v1122 = vpop.f32.mrf.mxu0
  %v1123 = vadd.f32 0.0, %v1122
  %v1124 = vpop.f32.mrf.mxu0
  %v1125 = vadd.f32 0.0, %v1124
  %1126 = vmatmul.bf16.gmra.mxu0 %v1041
  %v1127 = vpop.f32.mrf.mxu0
  %v1128 = vadd.f32 0.0, %v1127
  %v1129 = vpop.f32.mrf.mxu0
  %v1130 = vadd.f32 0.0, %v1129
  %1131 = vmatmul.bf16.gmra.mxu0 %v1044
  %v1132 = vpop.f32.mrf.mxu0
  %v1133 = vadd.f32 0.0, %v1132
  %v1134 = vpop.f32.mrf.mxu0
  %v1135 = vadd.f32 0.0, %v1134
  %1136 = vmatmul.bf16.gmra.mxu0 %v1047
  %v1137 = vpop.f32.mrf.mxu0
  %v1138 = vadd.f32 0.0, %v1137
  %v1139 = vpop.f32.mrf.mxu0
  %v1140 = vadd.f32 0.0, %v1139
  %1141 = vmatmul.bf16.gmra.mxu0 %v1050
  %v1142 = vpop.f32.mrf.mxu0
  %v1143 = vadd.f32 0.0, %v1142
  %v1144 = vpop.f32.mrf.mxu0
  %v1145 = vadd.f32 0.0, %v1144
  %1146 = vmatmul.bf16.gmra.mxu0 %v1053
  %v1147 = vpop.f32.mrf.mxu0
  %v1148 = vadd.f32 0.0, %v1147
  %v1149 = vpop.f32.mrf.mxu0
  %v1150 = vadd.f32 0.0, %v1149
  %1151 = vmatmul.bf16.gmra.mxu0 %v1056
  %v1152 = vpop.f32.mrf.mxu0
  %v1153 = vadd.f32 0.0, %v1152
  %v1154 = vpop.f32.mrf.mxu0
  %v1155 = vadd.f32 0.0, %v1154
  %1156 = vdwg.mxu0
  %v1157 = vmax.f32 %v228, %v508
  %v1158 = vmax.f32 %v230, %v510
  %v1159 = vmax.f32 %v233, %v513
  %v1160 = vmax.f32 %v235, %v515
  %v1161 = vmax.f32 %v238, %v518
  %v1162 = vmax.f32 %v240, %v520
  %v1163 = vmax.f32 %v243, %v523
  %v1164 = vmax.f32 %v245, %v525
  %v1165 = vmax.f32 %v248, %v528
  %v1166 = vmax.f32 %v250, %v530
  %v1167 = vmax.f32 %v253, %v533
  %v1168 = vmax.f32 %v255, %v535
  %v1169 = vmax.f32 %v258, %v538
  %v1170 = vmax.f32 %v260, %v540
  %v1171 = vmax.f32 %v263, %v543
  %v1172 = vmax.f32 %v265, %v545
  %v1173 = vmax.f32 %v268, %v548
  %v1174 = vmax.f32 %v270, %v550
  %v1175 = vmax.f32 %v273, %v553
  %v1176 = vmax.f32 %v275, %v555
  %v1177 = vmax.f32 %v278, %v558
  %v1178 = vmax.f32 %v280, %v560
  %v1179 = vmax.f32 %v283, %v563
  %v1180 = vmax.f32 %v285, %v565
  %v1181 = vmax.f32 %v288, %v568
  %v1182 = vmax.f32 %v290, %v570
  %v1183 = vmax.f32 %v293, %v573
  %v1184 = vmax.f32 %v295, %v575
  %v1185 = vmax.f32 %v298, %v578
  %v1186 = vmax.f32 %v300, %v580
  %v1187 = vmax.f32 %v303, %v583
  %v1188 = vmax.f32 %v305, %v585
  %v1189 = vmax.f32 %v308, %v588
  %v1190 = vmax.f32 %v310, %v590
  %v1191 = vmax.f32 %v313, %v593
  %v1192 = vmax.f32 %v315, %v595
  %v1193 = vmax.f32 %v788, %v1068
  %v1194 = vmax.f32 %v790, %v1070
  %v1195 = vmax.f32 %v793, %v1073
  %v1196 = vmax.f32 %v795, %v1075
  %v1197 = vmax.f32 %v798, %v1078
  %v1198 = vmax.f32 %v800, %v1080
  %v1199 = vmax.f32 %v803, %v1083
  %v1200 = vmax.f32 %v805, %v1085
  %v1201 = vmax.f32 %v808, %v1088
  %v1202 = vmax.f32 %v810, %v1090
  %v1203 = vmax.f32 %v813, %v1093
  %v1204 = vmax.f32 %v815, %v1095
  %v1205 = vmax.f32 %v818, %v1098
  %v1206 = vmax.f32 %v820, %v1100
  %v1207 = vmax.f32 %v823, %v1103
  %v1208 = vmax.f32 %v825, %v1105
  %v1209 = vmax.f32 %v828, %v1108
  %v1210 = vmax.f32 %v830, %v1110
  %v1211 = vmax.f32 %v833, %v1113
  %v1212 = vmax.f32 %v835, %v1115
  %v1213 = vmax.f32 %v838, %v1118
  %v1214 = vmax.f32 %v840, %v1120
  %v1215 = vmax.f32 %v843, %v1123
  %v1216 = vmax.f32 %v845, %v1125
  %v1217 = vmax.f32 %v848, %v1128
  %v1218 = vmax.f32 %v850, %v1130
  %v1219 = vmax.f32 %v853, %v1133
  %v1220 = vmax.f32 %v855, %v1135
  %v1221 = vmax.f32 %v858, %v1138
  %v1222 = vmax.f32 %v860, %v1140
  %v1223 = vmax.f32 %v863, %v1143
  %v1224 = vmax.f32 %v865, %v1145
  %v1225 = vmax.f32 %v868, %v1148
  %v1226 = vmax.f32 %v870, %v1150
  %v1227 = vmax.f32 %v873, %v1153
  %v1228 = vmax.f32 %v875, %v1155
  %v1229 = vmax.f32 %v1157, %v1193
  %v1230 = vmax.f32 %v1158, %v1194
  %v1231 = vmax.f32 %v1159, %v1195
  %v1232 = vmax.f32 %v1160, %v1196
  %v1233 = vmax.f32 %v1161, %v1197
  %v1234 = vmax.f32 %v1162, %v1198
  %v1235 = vmax.f32 %v1163, %v1199
  %v1236 = vmax.f32 %v1164, %v1200
  %v1237 = vmax.f32 %v1165, %v1201
  %v1238 = vmax.f32 %v1166, %v1202
  %v1239 = vmax.f32 %v1167, %v1203
  %v1240 = vmax.f32 %v1168, %v1204
  %v1241 = vmax.f32 %v1169, %v1205
  %v1242 = vmax.f32 %v1170, %v1206
  %v1243 = vmax.f32 %v1171, %v1207
  %v1244 = vmax.f32 %v1172, %v1208
  %v1245 = vmax.f32 %v1173, %v1209
  %v1246 = vmax.f32 %v1174, %v1210
  %v1247 = vmax.f32 %v1175, %v1211
  %v1248 = vmax.f32 %v1176, %v1212
  %v1249 = vmax.f32 %v1177, %v1213
  %v1250 = vmax.f32 %v1178, %v1214
  %v1251 = vmax.f32 %v1179, %v1215
  %v1252 = vmax.f32 %v1180, %v1216
  %v1253 = vmax.f32 %v1181, %v1217
  %v1254 = vmax.f32 %v1182, %v1218
  %v1255 = vmax.f32 %v1183, %v1219
  %v1256 = vmax.f32 %v1184, %v1220
  %v1257 = vmax.f32 %v1185, %v1221
  %v1258 = vmax.f32 %v1186, %v1222
  %v1259 = vmax.f32 %v1187, %v1223
  %v1260 = vmax.f32 %v1188, %v1224
  %v1261 = vmax.f32 %v1189, %v1225
  %v1262 = vmax.f32 %v1190, %v1226
  %v1263 = vmax.f32 %v1191, %v1227
  %v1264 = vmax.f32 %v1192, %v1228
  %v1265 = vld [vmem:[%s2] sm:$0x1]
  %v1267 = vperm.slane %v1265, 0
  %v1269 = vadd.f32 %v1229, %v1267
  %v1270 = vadd.f32 %v1230, %v1267
  %v1271 = vadd.f32 %v1231, %v1267
  %v1272 = vadd.f32 %v1232, %v1267
  %v1273 = vadd.f32 %v1233, %v1267
  %v1274 = vadd.f32 %v1234, %v1267
  %v1275 = vadd.f32 %v1235, %v1267
  %v1276 = vadd.f32 %v1236, %v1267
  %v1277 = vadd.f32 %v1237, %v1267
  %v1278 = vadd.f32 %v1238, %v1267
  %v1279 = vadd.f32 %v1239, %v1267
  %v1280 = vadd.f32 %v1240, %v1267
  %v1281 = vadd.f32 %v1241, %v1267
  %v1282 = vadd.f32 %v1242, %v1267
  %v1283 = vadd.f32 %v1243, %v1267
  %v1284 = vadd.f32 %v1244, %v1267
  %v1285 = vadd.f32 %v1245, %v1267
  %v1286 = vadd.f32 %v1246, %v1267
  %v1287 = vadd.f32 %v1247, %v1267
  %v1288 = vadd.f32 %v1248, %v1267
  %v1289 = vadd.f32 %v1249, %v1267
  %v1290 = vadd.f32 %v1250, %v1267
  %v1291 = vadd.f32 %v1251, %v1267
  %v1292 = vadd.f32 %v1252, %v1267
  %v1293 = vadd.f32 %v1253, %v1267
  %v1294 = vadd.f32 %v1254, %v1267
  %v1295 = vadd.f32 %v1255, %v1267
  %v1296 = vadd.f32 %v1256, %v1267
  %v1297 = vadd.f32 %v1257, %v1267
  %v1298 = vadd.f32 %v1258, %v1267
  %v1299 = vadd.f32 %v1259, %v1267
  %v1300 = vadd.f32 %v1260, %v1267
  %v1301 = vadd.f32 %v1261, %v1267
  %v1302 = vadd.f32 %v1262, %v1267
  %v1303 = vadd.f32 %v1263, %v1267
  %v1304 = vadd.f32 %v1264, %v1267
  %v1305 = vmax.f32 %v1269, 0.0
  %v1306 = vmax.f32 %v1270, 0.0
  %v1307 = vmax.f32 %v1271, 0.0
  %v1308 = vmax.f32 %v1272, 0.0
  %v1309 = vmax.f32 %v1273, 0.0
  %v1310 = vmax.f32 %v1274, 0.0
  %v1311 = vmax.f32 %v1275, 0.0
  %v1312 = vmax.f32 %v1276, 0.0
  %v1313 = vmax.f32 %v1277, 0.0
  %v1314 = vmax.f32 %v1278, 0.0
  %v1315 = vmax.f32 %v1279, 0.0
  %v1316 = vmax.f32 %v1280, 0.0
  %v1317 = vmax.f32 %v1281, 0.0
  %v1318 = vmax.f32 %v1282, 0.0
  %v1319 = vmax.f32 %v1283, 0.0
  %v1320 = vmax.f32 %v1284, 0.0
  %v1321 = vmax.f32 %v1285, 0.0
  %v1322 = vmax.f32 %v1286, 0.0
  %v1323 = vmax.f32 %v1287, 0.0
  %v1324 = vmax.f32 %v1288, 0.0
  %v1325 = vmax.f32 %v1289, 0.0
  %v1326 = vmax.f32 %v1290, 0.0
  %v1327 = vmax.f32 %v1291, 0.0
  %v1328 = vmax.f32 %v1292, 0.0
  %v1329 = vmax.f32 %v1293, 0.0
  %v1330 = vmax.f32 %v1294, 0.0
  %v1331 = vmax.f32 %v1295, 0.0
  %v1332 = vmax.f32 %v1296, 0.0
  %v1333 = vmax.f32 %v1297, 0.0
  %v1334 = vmax.f32 %v1298, 0.0
  %v1335 = vmax.f32 %v1299, 0.0
  %v1336 = vmax.f32 %v1300, 0.0
  %v1337 = vmax.f32 %v1301, 0.0
  %v1338 = vmax.f32 %v1302, 0.0
  %v1339 = vmax.f32 %v1303, 0.0
  %v1340 = vmax.f32 %v1304, 0.0
  %v1341 = vpack.c.bf16 %v1305, %v1305
  %v1342 = vpack.c.bf16 %v1306, %v1306
  %v1343 = vpack.c.bf16 %v1307, %v1307
  %v1344 = vpack.c.bf16 %v1308, %v1308
  %v1345 = vpack.c.bf16 %v1309, %v1309
  %v1346 = vpack.c.bf16 %v1310, %v1310
  %v1347 = vpack.c.bf16 %v1311, %v1311
  %v1348 = vpack.c.bf16 %v1312, %v1312
  %v1349 = vpack.c.bf16 %v1313, %v1313
  %v1350 = vpack.c.bf16 %v1314, %v1314
  %v1351 = vpack.c.bf16 %v1315, %v1315
  %v1352 = vpack.c.bf16 %v1316, %v1316
  %v1353 = vpack.c.bf16 %v1317, %v1317
  %v1354 = vpack.c.bf16 %v1318, %v1318
  %v1355 = vpack.c.bf16 %v1319, %v1319
  %v1356 = vpack.c.bf16 %v1320, %v1320
  %v1357 = vpack.c.bf16 %v1321, %v1321
  %v1358 = vpack.c.bf16 %v1322, %v1322
  %v1359 = vpack.c.bf16 %v1323, %v1323
  %v1360 = vpack.c.bf16 %v1324, %v1324
  %v1361 = vpack.c.bf16 %v1325, %v1325
  %v1362 = vpack.c.bf16 %v1326, %v1326
  %v1363 = vpack.c.bf16 %v1327, %v1327
  %v1364 = vpack.c.bf16 %v1328, %v1328
  %v1365 = vpack.c.bf16 %v1329, %v1329
  %v1366 = vpack.c.bf16 %v1330, %v1330
  %v1367 = vpack.c.bf16 %v1331, %v1331
  %v1368 = vpack.c.bf16 %v1332, %v1332
  %v1369 = vpack.c.bf16 %v1333, %v1333
  %v1370 = vpack.c.bf16 %v1334, %v1334
  %v1371 = vpack.c.bf16 %v1335, %v1335
  %v1372 = vpack.c.bf16 %v1336, %v1336
  %v1373 = vpack.c.bf16 %v1337, %v1337
  %v1374 = vpack.c.bf16 %v1338, %v1338
  %v1375 = vpack.c.bf16 %v1339, %v1339
  %v1376 = vpack.c.bf16 %v1340, %v1340
  %vm1377 = vcmask 76800
  %1378 = vst.msk [vmem:[%s3] sm:$0xf] %vm1377, %v1341
  %1379 = vst.msk [vmem:[%s3 + $0x4] sm:$0xf] %vm1377, %v1342
  %1380 = vst.msk [vmem:[%s3 + $0x8] sm:$0xf] %vm1377, %v1343
  %1381 = vst.msk [vmem:[%s3 + $0xc] sm:$0xf] %vm1377, %v1344
  %1382 = vst.msk [vmem:[%s3 + $0x10] sm:$0xf] %vm1377, %v1345
  %1383 = vst.msk [vmem:[%s3 + $0x14] sm:$0xf] %vm1377, %v1346
  %1384 = vst.msk [vmem:[%s3 + $0x18] sm:$0xf] %vm1377, %v1347
  %1385 = vst.msk [vmem:[%s3 + $0x1c] sm:$0xf] %vm1377, %v1348
  %1386 = vst.msk [vmem:[%s3 + $0x20] sm:$0xf] %vm1377, %v1349
  %1387 = vst.msk [vmem:[%s3 + $0x24] sm:$0xf] %vm1377, %v1350
  %1388 = vst.msk [vmem:[%s3 + $0x28] sm:$0xf] %vm1377, %v1351
  %1389 = vst.msk [vmem:[%s3 + $0x2c] sm:$0xf] %vm1377, %v1352
  %1390 = vst.msk [vmem:[%s3 + $0x30] sm:$0xf] %vm1377, %v1353
  %1391 = vst.msk [vmem:[%s3 + $0x34] sm:$0xf] %vm1377, %v1354
  %1392 = vst.msk [vmem:[%s3 + $0x38] sm:$0xf] %vm1377, %v1355
  %1393 = vst.msk [vmem:[%s3 + $0x3c] sm:$0xf] %vm1377, %v1356
  %1394 = vst.msk [vmem:[%s3 + $0x40] sm:$0xf] %vm1377, %v1357
  %1395 = vst.msk [vmem:[%s3 + $0x44] sm:$0xf] %vm1377, %v1358
  %1396 = vst.msk [vmem:[%s3 + $0x48] sm:$0xf] %vm1377, %v1359
  %1397 = vst.msk [vmem:[%s3 + $0x4c] sm:$0xf] %vm1377, %v1360
  %1398 = vst.msk [vmem:[%s3 + $0x50] sm:$0xf] %vm1377, %v1361
  %1399 = vst.msk [vmem:[%s3 + $0x54] sm:$0xf] %vm1377, %v1362
  %1400 = vst.msk [vmem:[%s3 + $0x58] sm:$0xf] %vm1377, %v1363
  %1401 = vst.msk [vmem:[%s3 + $0x5c] sm:$0xf] %vm1377, %v1364
  %1402 = vst.msk [vmem:[%s3 + $0x60] sm:$0xf] %vm1377, %v1365
  %1403 = vst.msk [vmem:[%s3 + $0x64] sm:$0xf] %vm1377, %v1366
  %1404 = vst.msk [vmem:[%s3 + $0x68] sm:$0xf] %vm1377, %v1367
  %1405 = vst.msk [vmem:[%s3 + $0x6c] sm:$0xf] %vm1377, %v1368
  %1406 = vst.msk [vmem:[%s3 + $0x70] sm:$0xf] %vm1377, %v1369
  %1407 = vst.msk [vmem:[%s3 + $0x74] sm:$0xf] %vm1377, %v1370
  %1408 = vst.msk [vmem:[%s3 + $0x78] sm:$0xf] %vm1377, %v1371
  %1409 = vst.msk [vmem:[%s3 + $0x7c] sm:$0xf] %vm1377, %v1372
  %1410 = vst.msk [vmem:[%s3 + $0x80] sm:$0xf] %vm1377, %v1373
  %1411 = vst.msk [vmem:[%s3 + $0x84] sm:$0xf] %vm1377, %v1374
  %1412 = vst.msk [vmem:[%s3 + $0x88] sm:$0xf] %vm1377, %v1375
  %1413 = vst.msk [vmem:[%s3 + $0x8c] sm:$0xf] %vm1377, %v1376
  // Predicated region
  $region14: #{mnist_conv_forward.3} parent=0 // pred_check
    _
  $region15: #{mnist_conv_forward.3} parent=0 // pred_check_branch
    %1415 = sbr.rel (0) target = $region17
  $region16: #{mnist_conv_forward.3} parent=0 // pred_region
    _
  $region17: #{mnist_conv_forward.3} parent=0 // pred_fallthru
    _
  // Predicated region
  $region18: #{mnist_conv_forward.3} parent=0 // pred_check
    _
  $region19: #{mnist_conv_forward.3} parent=0 // pred_check_branch
    %1417 = sbr.rel (0) target = $region21
  $region20: #{mnist_conv_forward.3} parent=0 // pred_region
    _
  $region21: #{mnist_conv_forward.3} parent=0 // pred_fallthru
    _

// kernel: mnist_conv_forward.5
$region0: #{mnist_conv_forward.5}
  #allocation0 [shape = 'u32[]', space=smem, size = 0x4, offset = 0x4, fixed_abs, tag = 'smem constant byte address 0x4 - core index']
  #allocation1 [shape = 'u32[72,128]{1,0:T(1,128)}', space=vmem, size = 0x9000, scoped, tag = 'internal scratch']
  %s0 = inlined_call_operand.vmem [shape: f32[2,320], index: 0, kind: input, shape index: {}]
  %s1 = inlined_call_operand.vmem [shape: f32[320,50], index: 1, kind: input, shape index: {}]
  %s2 = inlined_call_operand.vmem [shape: f32[1,50], index: 2, kind: input, shape index: {}]
  %s3 = inlined_call_operand.vmem [shape: f32[50,10], index: 3, kind: input, shape index: {}]
  %s4 = inlined_call_operand.vmem [shape: f32[1,10], index: 4, kind: input, shape index: {}]
  %s5 = inlined_call_operand.hbm [shape: f32[2,10], index: 5, kind: output, shape index: {}]
  %s6 = sld [smem:[#allocation0]]
  $region30: #{mnist_conv_forward.5} parent=0
    _
  %s8 = ssub.s32 1, %s6
  %s9 = scalar_select 0, %s8, %s6
  $region1: #{mnist_conv_forward.5} parent=0
    #allocation2 [shape = 'u8[1024]{0}', space=vmem, size = 0x400, scoped, tag = 'output window, operand 0, single buffered']
    #allocation3 [shape = 's32[1]{0}', space=sflag, size = 0x4, scoped, tag = 'scoped memory for mnist_conv_forward.5']
    %10 = vsyncpa [#allocation3], 0
    // Predicated region
    $region2: #{mnist_conv_forward.5} parent=1 // pred_check
      _
    $region3: #{mnist_conv_forward.5} parent=1 // pred_check_branch
      %12 = sbr.rel (0) target = $region5
    $region4: #{mnist_conv_forward.5} parent=1 // pred_region
      _
    $region5: #{mnist_conv_forward.5} parent=1 // pred_fallthru
      _
    // Predicated region
    $region6: #{mnist_conv_forward.5} parent=1 // pred_check
      _
    $region7: #{mnist_conv_forward.5} parent=1 // pred_check_branch
      %14 = sbr.rel (0) target = $region9
    $region8: #{mnist_conv_forward.5} parent=1 // pred_region
      _
    $region9: #{mnist_conv_forward.5} parent=1 // pred_fallthru
      _
    // Predicated region
    $region10: #{mnist_conv_forward.5} parent=1 // pred_check
      _
    $region11: #{mnist_conv_forward.5} parent=1 // pred_check_branch
      %16 = sbr.rel (0) target = $region13
    $region12: #{mnist_conv_forward.5} parent=1 // pred_region
      _
    $region13: #{mnist_conv_forward.5} parent=1 // pred_fallthru
      _
    // Predicated region
    $region14: #{mnist_conv_forward.5} parent=1 // pred_check
      _
    $region15: #{mnist_conv_forward.5} parent=1 // pred_check_branch
      %18 = sbr.rel (0) target = $region17
    $region16: #{mnist_conv_forward.5} parent=1 // pred_region
      _
    $region17: #{mnist_conv_forward.5} parent=1 // pred_fallthru
      _
    // Predicated region
    $region18: #{mnist_conv_forward.5} parent=1 // pred_check
      _
    $region19: #{mnist_conv_forward.5} parent=1 // pred_check_branch
      %20 = sbr.rel (0) target = $region21
    $region20: #{mnist_conv_forward.5} parent=1 // pred_region
      _
    $region21: #{mnist_conv_forward.5} parent=1 // pred_fallthru
      _
    %v21 = vld [vmem:[%s0] sm:$0x3f]
    %v22 = vld [vmem:[%s1] sm:$0xff]
    %v23 = vld [vmem:[%s1 + $0x8] sm:$0xff]
    %v24 = vld [vmem:[%s1 + $0x10] sm:$0xff]
    %v25 = vld [vmem:[%s1 + $0x18] sm:$0xff]
    %v26 = vld [vmem:[%s1 + $0x20] sm:$0xff]
    %v27 = vld [vmem:[%s1 + $0x28] sm:$0xff]
    %v28 = vld [vmem:[%s1 + $0x30] sm:$0xff]
    %v29 = vld [vmem:[%s1 + $0x38] sm:$0xff]
    %v30 = vld [vmem:[%s1 + $0x40] sm:$0xff]
    %v31 = vld [vmem:[%s1 + $0x48] sm:$0xff]
    %v32 = vld [vmem:[%s1 + $0x50] sm:$0xff]
    %v33 = vld [vmem:[%s1 + $0x58] sm:$0xff]
    %v34 = vld [vmem:[%s1 + $0x60] sm:$0xff]
    %v35 = vld [vmem:[%s1 + $0x68] sm:$0xff]
    %v36 = vld [vmem:[%s1 + $0x70] sm:$0xff]
    %v37 = vld [vmem:[%s1 + $0x78] sm:$0xff]
    %v38 = vld [vmem:[%s1 + $0x80] sm:$0xff]
    %v39 = vld [vmem:[%s1 + $0x88] sm:$0xff]
    %v40 = vld [vmem:[%s1 + $0x90] sm:$0xff]
    %v41 = vld [vmem:[%s1 + $0x98] sm:$0xff]
    %v42 = vld [vmem:[%s1 + $0xa0] sm:$0xff]
    %v43 = vld [vmem:[%s1 + $0xa8] sm:$0xff]
    %v44 = vld [vmem:[%s1 + $0xb0] sm:$0xff]
    %v45 = vld [vmem:[%s1 + $0xb8] sm:$0xff]
    %v46 = vld [vmem:[%s1 + $0xc0] sm:$0xff]
    %v47 = vld [vmem:[%s1 + $0xc8] sm:$0xff]
    %v48 = vld [vmem:[%s1 + $0xd0] sm:$0xff]
    %v49 = vld [vmem:[%s1 + $0xd8] sm:$0xff]
    %v50 = vld [vmem:[%s1 + $0xe0] sm:$0xff]
    %v51 = vld [vmem:[%s1 + $0xe8] sm:$0xff]
    %v52 = vld [vmem:[%s1 + $0xf0] sm:$0xff]
    %v53 = vld [vmem:[%s1 + $0xf8] sm:$0xff]
    %v54 = vld [vmem:[%s1 + $0x100] sm:$0xff]
    %v55 = vld [vmem:[%s1 + $0x108] sm:$0xff]
    %v56 = vld [vmem:[%s1 + $0x110] sm:$0xff]
    %v57 = vld [vmem:[%s1 + $0x118] sm:$0xff]
    %v58 = vld [vmem:[%s1 + $0x120] sm:$0xff]
    %v59 = vld [vmem:[%s1 + $0x128] sm:$0xff]
    %v60 = vld [vmem:[%s1 + $0x130] sm:$0xff]
    %v61 = vld [vmem:[%s1 + $0x138] sm:$0xff]
    %v62 = vld [vmem:[%s2] sm:$0x1]
    %v64 = vperm.slane %v62, 0
    %67 = vst [vmem:[#allocation1] ss:$4 sm:$0xff] %v21
    %v68 = vld.sshfl [vmem:[#allocation1] sm:$0xff pattern:$0x73625140]
    %v69 = vld.sshfl [vmem:[#allocation1 + $0x8] sm:$0xff pattern:$0x73625140]
    %v70 = vld.sshfl [vmem:[#allocation1 + $0x10] sm:$0xff pattern:$0x73625140]
    %vm73 = vcmask 523264
    %v74 = vsel %vm73, %v70, 0
    %76 = vmatpush.msra.mxu0 %v37
    %77 = vmatpush.msra.mxu0 %v36
    %78 = vmatpush.msra.mxu0 %v35
    %79 = vmatpush.msra.mxu0 %v34
    %80 = vmatpush.msra.mxu0 %v33
    %81 = vmatpush.msra.mxu0 %v32
    %82 = vmatpush.msra.mxu0 %v31
    %83 = vmatpush.msra.mxu0 %v30
    %84 = vmatpush.msra.mxu0 %v29
    %85 = vmatpush.msra.mxu0 %v28
    %86 = vmatpush.msra.mxu0 %v27
    %87 = vmatpush.msra.mxu0 %v26
    %88 = vmatpush.msra.mxu0 %v25
    %89 = vmatpush.msra.mxu0 %v24
    %90 = vmatpush.msra.mxu0 %v23
    %91 = vmatpush.msra.mxu0 %v22
    %92 = vmatmul.f32.gmra.mxu0 %v68
    %v93 = vpop.f32.mrf.mxu0
    %v94 = vadd.f32 %v64, %v93
    %95 = vdwg.mxu0
    %96 = vmatpush.msra.mxu0 %v53
    %97 = vmatpush.msra.mxu0 %v52
    %98 = vmatpush.msra.mxu0 %v51
    %99 = vmatpush.msra.mxu0 %v50
    %100 = vmatpush.msra.mxu0 %v49
    %101 = vmatpush.msra.mxu0 %v48
    %102 = vmatpush.msra.mxu0 %v47
    %103 = vmatpush.msra.mxu0 %v46
    %104 = vmatpush.msra.mxu0 %v45
    %105 = vmatpush.msra.mxu0 %v44
    %106 = vmatpush.msra.mxu0 %v43
    %107 = vmatpush.msra.mxu0 %v42
    %108 = vmatpush.msra.mxu0 %v41
    %109 = vmatpush.msra.mxu0 %v40
    %110 = vmatpush.msra.mxu0 %v39
    %111 = vmatpush.msra.mxu0 %v38
    %112 = vmatmul.f32.gmra.mxu0 %v69
    %v113 = vpop.f32.mrf.mxu0
    %v114 = vadd.f32 %v94, %v113
    %115 = vdwg.mxu0
    %116 = vmatpush.msra.mxu0 0.0
    %117 = vmatpush.msra.mxu0 0.0
    %118 = vmatpush.msra.mxu0 0.0
    %119 = vmatpush.msra.mxu0 0.0
    %120 = vmatpush.msra.mxu0 0.0
    %121 = vmatpush.msra.mxu0 0.0
    %122 = vmatpush.msra.mxu0 0.0
    %123 = vmatpush.msra.mxu0 0.0
    %124 = vmatpush.msra.mxu0 %v61
    %125 = vmatpush.msra.mxu0 %v60
    %126 = vmatpush.msra.mxu0 %v59
    %127 = vmatpush.msra.mxu0 %v58
    %128 = vmatpush.msra.mxu0 %v57
    %129 = vmatpush.msra.mxu0 %v56
    %130 = vmatpush.msra.mxu0 %v55
    %131 = vmatpush.msra.mxu0 %v54
    %132 = vmatmul.f32.gmra.mxu0 %v74
    %v133 = vpop.f32.mrf.mxu0
    %v134 = vadd.f32 %v114, %v133
    %135 = vdwg.mxu0
    %v136 = vmax.f32 %v134, 0.0
    %v137 = vld [vmem:[%s3] sm:$0xff]
    %v138 = vld [vmem:[%s3 + $0x8] sm:$0xff]
    %v139 = vld [vmem:[%s3 + $0x10] sm:$0xff]
    %v140 = vld [vmem:[%s3 + $0x18] sm:$0xff]
    %v141 = vld [vmem:[%s3 + $0x20] sm:$0xff]
    %v142 = vld [vmem:[%s3 + $0x28] sm:$0xff]
    %v143 = vld [vmem:[%s3 + $0x30] sm:$0x3]
    %v144 = vld [vmem:[%s4] sm:$0x1]
    %v146 = vperm.slane %v144, 0
    %vm148 = vcmask 408576
    %v150 = vsel %vm148, %v136, 0
    %vm152 = vcmask 1041408
    %v154 = vsel %vm152, %v143, 0
    %156 = vmatpush.msra.mxu0 0.0
    %157 = vmatpush.msra.mxu0 0.0
    %158 = vmatpush.msra.mxu0 0.0
    %159 = vmatpush.msra.mxu0 0.0
    %160 = vmatpush.msra.mxu0 0.0
    %161 = vmatpush.msra.mxu0 0.0
    %162 = vmatpush.msra.mxu0 0.0
    %163 = vmatpush.msra.mxu0 0.0
    %164 = vmatpush.msra.mxu0 0.0
    %165 = vmatpush.msra.mxu0 %v154
    %166 = vmatpush.msra.mxu0 %v142
    %167 = vmatpush.msra.mxu0 %v141
    %168 = vmatpush.msra.mxu0 %v140
    %169 = vmatpush.msra.mxu0 %v139
    %170 = vmatpush.msra.mxu0 %v138
    %171 = vmatpush.msra.mxu0 %v137
    %172 = vmatmul.f32.gmra.mxu0 %v150
    %v173 = vpop.f32.mrf.mxu0
    %v174 = vadd.f32 %v146, %v173
    %175 = vdwg.mxu0
    %vm176 = vcmask 74752
    %v177 = vsel %vm176, %v174, -inf
    %178 = vmax.xlane.f32.xlu0 %v177
    %v179 = vpop.xlane.xlu0 %178
    %v180 = vsub.f32 %v174, %v179
    %v181 = vmul.f32 %v180, 1.442695
    %v182 = vpow.pop %v181
    %v183 = vsel %vm176, %v182, 0.0
    %184 = vadd.xlane.f32.xlu0 %v183
    %v185 = vpop.xlane.xlu0 %184
    %v186 = vlog2.pop %v185
    %v187 = vmul.f32 %v186, 0.6931472
    %v188 = vsub.f32 %v180, %v187
    %189 = vst.msk [vmem:[#allocation2] sm:$0x3] %vm176, %v188
    // Predicated region
    $region22: #{mnist_conv_forward.5} parent=1 // pred_check
      _
    $region23: #{mnist_conv_forward.5} parent=1 // pred_check_branch
      %191 = sbr.rel (0) target = $region25
    $region24: #{mnist_conv_forward.5} parent=1 // pred_region
      %193 = vsyncadd [#allocation3], 0
      %s195 = sshll.u32 [#allocation2], 4
      %s196 = int_to_ptr.vmem [resolvable:$true] %s195
      %s197 = sshll.u32 %s5, 4
      %s198 = int_to_ptr.hbm [resolvable:$true] %s197
      %200 = dma.vmem_to_hbm [thread:$0]  %s196, 32, %s198, [#allocation3]
    $region25: #{mnist_conv_forward.5} parent=1 // pred_fallthru
      _
    // Predicated region
    $region26: #{mnist_conv_forward.5} parent=1 // pred_check
      _
    $region27: #{mnist_conv_forward.5} parent=1 // pred_check_branch
      %202 = sbr.rel (0) target = $region29
    $region28: #{mnist_conv_forward.5} parent=1 // pred_region
      %204 = dma.done [#allocation3], 32
    $region29: #{mnist_conv_forward.5} parent=1 // pred_fallthru
      _
    %205 = vsyncpa [#allocation3], 1

// kernel: mnist_conv_forward.4
$region0: #{mnist_conv_forward.4}
  #allocation0 [shape = 'u32[]', space=smem, size = 0x4, offset = 0x4, fixed_abs, tag = 'smem constant byte address 0x4 - core index']
  #allocation1 [shape = 'u32[72,128]{1,0:T(1,128)}', space=vmem, size = 0x9000, scoped, tag = 'internal scratch']
  %s0 = inlined_call_operand.vmem [shape: bf16[4,32,250], index: 0, kind: input, shape index: {}]
  %s1 = inlined_call_operand.vmem [shape: bf16[250,20], index: 1, kind: input, shape index: {}]
  %s2 = inlined_call_operand.vmem [shape: f32[1,20], index: 2, kind: input, shape index: {}]
  %s3 = inlined_call_operand.vmem [shape: f32[32,20], index: 3, kind: output, shape index: {}]
  %s4 = sld [smem:[#allocation0]]
  $region22: #{mnist_conv_forward.4} parent=0
    _
  %s6 = ssub.s32 1, %s4
  %s7 = scalar_select 0, %s6, %s4
  // Predicated region
  $region2: #{mnist_conv_forward.4} parent=0 // pred_check
    _
  $region3: #{mnist_conv_forward.4} parent=0 // pred_check_branch
    %9 = sbr.rel (0) target = $region5
  $region4: #{mnist_conv_forward.4} parent=0 // pred_region
    _
  $region5: #{mnist_conv_forward.4} parent=0 // pred_fallthru
    _
  // Predicated region
  $region6: #{mnist_conv_forward.4} parent=0 // pred_check
    _
  $region7: #{mnist_conv_forward.4} parent=0 // pred_check_branch
    %11 = sbr.rel (0) target = $region9
  $region8: #{mnist_conv_forward.4} parent=0 // pred_region
    _
  $region9: #{mnist_conv_forward.4} parent=0 // pred_fallthru
    _
  // Predicated region
  $region10: #{mnist_conv_forward.4} parent=0 // pred_check
    _
  $region11: #{mnist_conv_forward.4} parent=0 // pred_check_branch
    %13 = sbr.rel (0) target = $region13
  $region12: #{mnist_conv_forward.4} parent=0 // pred_region
    _
  $region13: #{mnist_conv_forward.4} parent=0 // pred_fallthru
    _
  %v14 = vld [vmem:[%s1] sm:$0xf]
  %v15 = vld [vmem:[%s1 + $0x4] sm:$0xf]
  %v16 = vld [vmem:[%s1 + $0x8] sm:$0xf]
  %v17 = vld [vmem:[%s1 + $0xc] sm:$0xf]
  %v18 = vld [vmem:[%s1 + $0x10] sm:$0xf]
  %v19 = vld [vmem:[%s1 + $0x14] sm:$0xf]
  %v20 = vld [vmem:[%s1 + $0x18] sm:$0xf]
  %v21 = vld [vmem:[%s1 + $0x1c] sm:$0xf]
  %v22 = vld [vmem:[%s1 + $0x20] sm:$0xf]
  %v23 = vld [vmem:[%s1 + $0x24] sm:$0xf]
  %v24 = vld [vmem:[%s1 + $0x28] sm:$0xf]
  %v25 = vld [vmem:[%s1 + $0x2c] sm:$0xf]
  %v26 = vld [vmem:[%s1 + $0x30] sm:$0xf]
  %v27 = vld [vmem:[%s1 + $0x34] sm:$0xf]
  %v28 = vld [vmem:[%s1 + $0x38] sm:$0xf]
  %v29 = vld [vmem:[%s1 + $0x3c] sm:$0xf]
  %v30 = vld [vmem:[%s1 + $0x40] sm:$0xf]
  %v31 = vld [vmem:[%s1 + $0x44] sm:$0xf]
  %v32 = vld [vmem:[%s1 + $0x48] sm:$0xf]
  %v33 = vld [vmem:[%s1 + $0x4c] sm:$0xf]
  %v34 = vld [vmem:[%s1 + $0x50] sm:$0xf]
  %v35 = vld [vmem:[%s1 + $0x54] sm:$0xf]
  %v36 = vld [vmem:[%s1 + $0x58] sm:$0xf]
  %v37 = vld [vmem:[%s1 + $0x5c] sm:$0xf]
  %v38 = vld [vmem:[%s1 + $0x60] sm:$0xf]
  %v39 = vld [vmem:[%s1 + $0x64] sm:$0xf]
  %v40 = vld [vmem:[%s1 + $0x68] sm:$0xf]
  %v41 = vld [vmem:[%s1 + $0x6c] sm:$0xf]
  %v42 = vld [vmem:[%s1 + $0x70] sm:$0xf]
  %v43 = vld [vmem:[%s1 + $0x74] sm:$0xf]
  %v44 = vld [vmem:[%s1 + $0x78] sm:$0xf]
  %v45 = vld [vmem:[%s1 + $0x7c] sm:$0x1]
  %v46 = vld [vmem:[%s0] sm:$0xff]
  %v47 = vld [vmem:[%s0 + $0x8] sm:$0xff]
  %v48 = vld [vmem:[%s0 + $0x10] sm:$0xff]
  %v49 = vld [vmem:[%s0 + $0x18] sm:$0xff]
  %v54 = vunpack.c.l.b16 %v46
  %v55 = vunpack.c.h.b16 %v46
  %v56 = vunpack.c.l.b16 %v47
  %v57 = vunpack.c.h.b16 %v47
  %v58 = vunpack.c.l.b16 %v48
  %v59 = vunpack.c.h.b16 %v48
  %v60 = vunpack.c.l.b16 %v49
  %v61 = vunpack.c.h.b16 %v49
  %v62 = vpack.c.b16 %v56, %v54
  %v63 = vpack.c.b16 %v57, %v55
  %v64 = vpack.c.b16 %v60, %v58
  %v65 = vpack.c.b16 %v61, %v59
  %v100 = vunpack.c.l.b16 %v14
  %v101 = vunpack.c.l.b16 %v15
  %v102 = vunpack.c.l.b16 %v16
  %v103 = vunpack.c.l.b16 %v17
  %v104 = vunpack.c.l.b16 %v18
  %v105 = vunpack.c.l.b16 %v19
  %v106 = vunpack.c.l.b16 %v20
  %v107 = vunpack.c.l.b16 %v21
  %v108 = vunpack.c.l.b16 %v22
  %v109 = vunpack.c.l.b16 %v23
  %v110 = vunpack.c.l.b16 %v24
  %v111 = vunpack.c.l.b16 %v25
  %v112 = vunpack.c.l.b16 %v26
  %v113 = vunpack.c.l.b16 %v27
  %v114 = vunpack.c.l.b16 %v28
  %v115 = vunpack.c.l.b16 %v29
  %v116 = vunpack.c.l.b16 %v30
  %v117 = vunpack.c.l.b16 %v31
  %v118 = vunpack.c.l.b16 %v32
  %v119 = vunpack.c.l.b16 %v33
  %v120 = vunpack.c.l.b16 %v34
  %v121 = vunpack.c.l.b16 %v35
  %v122 = vunpack.c.l.b16 %v36
  %v123 = vunpack.c.l.b16 %v37
  %v124 = vunpack.c.l.b16 %v38
  %v125 = vunpack.c.l.b16 %v39
  %v126 = vunpack.c.l.b16 %v40
  %v127 = vunpack.c.l.b16 %v41
  %v128 = vunpack.c.l.b16 %v42
  %v129 = vunpack.c.l.b16 %v43
  %v130 = vunpack.c.l.b16 %v44
  %v131 = vunpack.c.l.b16 %v45
  %v132 = vpack.c.b16 %v101, %v100
  %v133 = vpack.c.b16 %v103, %v102
  %v134 = vpack.c.b16 %v105, %v104
  %v135 = vpack.c.b16 %v107, %v106
  %v136 = vpack.c.b16 %v109, %v108
  %v137 = vpack.c.b16 %v111, %v110
  %v138 = vpack.c.b16 %v113, %v112
  %v139 = vpack.c.b16 %v115, %v114
  %v140 = vpack.c.b16 %v117, %v116
  %v141 = vpack.c.b16 %v119, %v118
  %v142 = vpack.c.b16 %v121, %v120
  %v143 = vpack.c.b16 %v123, %v122
  %v144 = vpack.c.b16 %v125, %v124
  %v145 = vpack.c.b16 %v127, %v126
  %v146 = vpack.c.b16 %v129, %v128
  %v147 = vpack.c.b16 %v131, %v130
  %vm163 = vcmask 998400
  %v165 = vsel %vm163, %v63, 0
  %v168 = vsel %vm163, %v65, 0
  %vm170 = vcmask 1044480
  %v172 = vsel %vm170, %v147, 0
  %174 = vmatpush.bf16.msra.mxu0 %v139
  %175 = vmatpush.bf16.msra.mxu0 %v138
  %176 = vmatpush.bf16.msra.mxu0 %v137
  %177 = vmatpush.bf16.msra.mxu0 %v136
  %178 = vmatpush.bf16.msra.mxu0 %v135
  %179 = vmatpush.bf16.msra.mxu0 %v134
  %180 = vmatpush.bf16.msra.mxu0 %v133
  %181 = vmatpush.bf16.msra.mxu0 %v132
  %182 = vmatmul.bf16.gmra.mxu0 %v62
  %v183 = vpop.f32.mrf.mxu0
  %v184 = vadd.f32 0.0, %v183
  %v185 = vpop.f32.mrf.mxu0
  %v186 = vadd.f32 0.0, %v185
  %187 = vmatmul.bf16.gmra.mxu0 %v64
  %v188 = vpop.f32.mrf.mxu0
  %v189 = vadd.f32 0.0, %v188
  %v190 = vpop.f32.mrf.mxu0
  %v191 = vadd.f32 0.0, %v190
  %192 = vdwg.mxu0
  %193 = vmatpush.bf16.msra.mxu0 %v172
  %194 = vmatpush.bf16.msra.mxu0 %v146
  %195 = vmatpush.bf16.msra.mxu0 %v145
  %196 = vmatpush.bf16.msra.mxu0 %v144
  %197 = vmatpush.bf16.msra.mxu0 %v143
  %198 = vmatpush.bf16.msra.mxu0 %v142
  %199 = vmatpush.bf16.msra.mxu0 %v141
  %200 = vmatpush.bf16.msra.mxu0 %v140
  %201 = vmatmul.bf16.gmra.mxu0 %v165
  %v202 = vpop.f32.mrf.mxu0
  %v203 = vadd.f32 %v184, %v202
  %v204 = vpop.f32.mrf.mxu0
  %v205 = vadd.f32 %v186, %v204
  %206 = vmatmul.bf16.gmra.mxu0 %v168
  %v207 = vpop.f32.mrf.mxu0
  %v208 = vadd.f32 %v189, %v207
  %v209 = vpop.f32.mrf.mxu0
  %v210 = vadd.f32 %v191, %v209
  %211 = vdwg.mxu0
  %s212 = scalar_lea.vmem %s0, 32
  %v213 = vld [vmem:[%s212] sm:$0xff]
  %v214 = vld [vmem:[%s212 + $0x8] sm:$0xff]
  %v215 = vld [vmem:[%s212 + $0x10] sm:$0xff]
  %v216 = vld [vmem:[%s212 + $0x18] sm:$0xff]
  %v221 = vunpack.c.l.b16 %v213
  %v222 = vunpack.c.h.b16 %v213
  %v223 = vunpack.c.l.b16 %v214
  %v224 = vunpack.c.h.b16 %v214
  %v225 = vunpack.c.l.b16 %v215
  %v226 = vunpack.c.h.b16 %v215
  %v227 = vunpack.c.l.b16 %v216
  %v228 = vunpack.c.h.b16 %v216
  %v229 = vpack.c.b16 %v223, %v221
  %v230 = vpack.c.b16 %v224, %v222
  %v231 = vpack.c.b16 %v227, %v225
  %v232 = vpack.c.b16 %v228, %v226
  %v236 = vsel %vm163, %v230, 0
  %v239 = vsel %vm163, %v232, 0
  %241 = vmatpush.bf16.msra.mxu0 %v139
  %242 = vmatpush.bf16.msra.mxu0 %v138
  %243 = vmatpush.bf16.msra.mxu0 %v137
  %244 = vmatpush.bf16.msra.mxu0 %v136
  %245 = vmatpush.bf16.msra.mxu0 %v135
  %246 = vmatpush.bf16.msra.mxu0 %v134
  %247 = vmatpush.bf16.msra.mxu0 %v133
  %248 = vmatpush.bf16.msra.mxu0 %v132
  %249 = vmatmul.bf16.gmra.mxu0 %v229
  %v250 = vpop.f32.mrf.mxu0
  %v251 = vadd.f32 0.0, %v250
  %v252 = vpop.f32.mrf.mxu0
  %v253 = vadd.f32 0.0, %v252
  %254 = vmatmul.bf16.gmra.mxu0 %v231
  %v255 = vpop.f32.mrf.mxu0
  %v256 = vadd.f32 0.0, %v255
  %v257 = vpop.f32.mrf.mxu0
  %v258 = vadd.f32 0.0, %v257
  %259 = vdwg.mxu0
  %260 = vmatpush.bf16.msra.mxu0 %v172
  %261 = vmatpush.bf16.msra.mxu0 %v146
  %262 = vmatpush.bf16.msra.mxu0 %v145
  %263 = vmatpush.bf16.msra.mxu0 %v144
  %264 = vmatpush.bf16.msra.mxu0 %v143
  %265 = vmatpush.bf16.msra.mxu0 %v142
  %266 = vmatpush.bf16.msra.mxu0 %v141
  %267 = vmatpush.bf16.msra.mxu0 %v140
  %268 = vmatmul.bf16.gmra.mxu0 %v236
  %v269 = vpop.f32.mrf.mxu0
  %v270 = vadd.f32 %v251, %v269
  %v271 = vpop.f32.mrf.mxu0
  %v272 = vadd.f32 %v253, %v271
  %273 = vmatmul.bf16.gmra.mxu0 %v239
  %v274 = vpop.f32.mrf.mxu0
  %v275 = vadd.f32 %v256, %v274
  %v276 = vpop.f32.mrf.mxu0
  %v277 = vadd.f32 %v258, %v276
  %278 = vdwg.mxu0
  %s279 = scalar_lea.vmem %s0, 64
  %v280 = vld [vmem:[%s279] sm:$0xff]
  %v281 = vld [vmem:[%s279 + $0x8] sm:$0xff]
  %v282 = vld [vmem:[%s279 + $0x10] sm:$0xff]
  %v283 = vld [vmem:[%s279 + $0x18] sm:$0xff]
  %v288 = vunpack.c.l.b16 %v280
  %v289 = vunpack.c.h.b16 %v280
  %v290 = vunpack.c.l.b16 %v281
  %v291 = vunpack.c.h.b16 %v281
  %v292 = vunpack.c.l.b16 %v282
  %v293 = vunpack.c.h.b16 %v282
  %v294 = vunpack.c.l.b16 %v283
  %v295 = vunpack.c.h.b16 %v283
  %v296 = vpack.c.b16 %v290, %v288
  %v297 = vpack.c.b16 %v291, %v289
  %v298 = vpack.c.b16 %v294, %v292
  %v299 = vpack.c.b16 %v295, %v293
  %v303 = vsel %vm163, %v297, 0
  %v306 = vsel %vm163, %v299, 0
  %308 = vmatpush.bf16.msra.mxu0 %v139
  %309 = vmatpush.bf16.msra.mxu0 %v138
  %310 = vmatpush.bf16.msra.mxu0 %v137
  %311 = vmatpush.bf16.msra.mxu0 %v136
  %312 = vmatpush.bf16.msra.mxu0 %v135
  %313 = vmatpush.bf16.msra.mxu0 %v134
  %314 = vmatpush.bf16.msra.mxu0 %v133
  %315 = vmatpush.bf16.msra.mxu0 %v132
  %316 = vmatmul.bf16.gmra.mxu0 %v296
  %v317 = vpop.f32.mrf.mxu0
  %v318 = vadd.f32 0.0, %v317
  %v319 = vpop.f32.mrf.mxu0
  %v320 = vadd.f32 0.0, %v319
  %321 = vmatmul.bf16.gmra.mxu0 %v298
  %v322 = vpop.f32.mrf.mxu0
  %v323 = vadd.f32 0.0, %v322
  %v324 = vpop.f32.mrf.mxu0
  %v325 = vadd.f32 0.0, %v324
  %326 = vdwg.mxu0
  %327 = vmatpush.bf16.msra.mxu0 %v172
  %328 = vmatpush.bf16.msra.mxu0 %v146
  %329 = vmatpush.bf16.msra.mxu0 %v145
  %330 = vmatpush.bf16.msra.mxu0 %v144
  %331 = vmatpush.bf16.msra.mxu0 %v143
  %332 = vmatpush.bf16.msra.mxu0 %v142
  %333 = vmatpush.bf16.msra.mxu0 %v141
  %334 = vmatpush.bf16.msra.mxu0 %v140
  %335 = vmatmul.bf16.gmra.mxu0 %v303
  %v336 = vpop.f32.mrf.mxu0
  %v337 = vadd.f32 %v318, %v336
  %v338 = vpop.f32.mrf.mxu0
  %v339 = vadd.f32 %v320, %v338
  %340 = vmatmul.bf16.gmra.mxu0 %v306
  %v341 = vpop.f32.mrf.mxu0
  %v342 = vadd.f32 %v323, %v341
  %v343 = vpop.f32.mrf.mxu0
  %v344 = vadd.f32 %v325, %v343
  %345 = vdwg.mxu0
  %s346 = scalar_lea.vmem %s0, 96
  %v347 = vld [vmem:[%s346] sm:$0xff]
  %v348 = vld [vmem:[%s346 + $0x8] sm:$0xff]
  %v349 = vld [vmem:[%s346 + $0x10] sm:$0xff]
  %v350 = vld [vmem:[%s346 + $0x18] sm:$0xff]
  %v355 = vunpack.c.l.b16 %v347
  %v356 = vunpack.c.h.b16 %v347
  %v357 = vunpack.c.l.b16 %v348
  %v358 = vunpack.c.h.b16 %v348
  %v359 = vunpack.c.l.b16 %v349
  %v360 = vunpack.c.h.b16 %v349
  %v361 = vunpack.c.l.b16 %v350
  %v362 = vunpack.c.h.b16 %v350
  %v363 = vpack.c.b16 %v357, %v355
  %v364 = vpack.c.b16 %v358, %v356
  %v365 = vpack.c.b16 %v361, %v359
  %v366 = vpack.c.b16 %v362, %v360
  %v370 = vsel %vm163, %v364, 0
  %v373 = vsel %vm163, %v366, 0
  %375 = vmatpush.bf16.msra.mxu0 %v139
  %376 = vmatpush.bf16.msra.mxu0 %v138
  %377 = vmatpush.bf16.msra.mxu0 %v137
  %378 = vmatpush.bf16.msra.mxu0 %v136
  %379 = vmatpush.bf16.msra.mxu0 %v135
  %380 = vmatpush.bf16.msra.mxu0 %v134
  %381 = vmatpush.bf16.msra.mxu0 %v133
  %382 = vmatpush.bf16.msra.mxu0 %v132
  %383 = vmatmul.bf16.gmra.mxu0 %v363
  %v384 = vpop.f32.mrf.mxu0
  %v385 = vadd.f32 0.0, %v384
  %v386 = vpop.f32.mrf.mxu0
  %v387 = vadd.f32 0.0, %v386
  %388 = vmatmul.bf16.gmra.mxu0 %v365
  %v389 = vpop.f32.mrf.mxu0
  %v390 = vadd.f32 0.0, %v389
  %v391 = vpop.f32.mrf.mxu0
  %v392 = vadd.f32 0.0, %v391
  %393 = vdwg.mxu0
  %394 = vmatpush.bf16.msra.mxu0 %v172
  %395 = vmatpush.bf16.msra.mxu0 %v146
  %396 = vmatpush.bf16.msra.mxu0 %v145
  %397 = vmatpush.bf16.msra.mxu0 %v144
  %398 = vmatpush.bf16.msra.mxu0 %v143
  %399 = vmatpush.bf16.msra.mxu0 %v142
  %400 = vmatpush.bf16.msra.mxu0 %v141
  %401 = vmatpush.bf16.msra.mxu0 %v140
  %402 = vmatmul.bf16.gmra.mxu0 %v370
  %v403 = vpop.f32.mrf.mxu0
  %v404 = vadd.f32 %v385, %v403
  %v405 = vpop.f32.mrf.mxu0
  %v406 = vadd.f32 %v387, %v405
  %407 = vmatmul.bf16.gmra.mxu0 %v373
  %v408 = vpop.f32.mrf.mxu0
  %v409 = vadd.f32 %v390, %v408
  %v410 = vpop.f32.mrf.mxu0
  %v411 = vadd.f32 %v392, %v410
  %412 = vdwg.mxu0
  %v413 = vmax.f32 %v203, %v270
  %v414 = vmax.f32 %v205, %v272
  %v415 = vmax.f32 %v208, %v275
  %v416 = vmax.f32 %v210, %v277
  %v417 = vmax.f32 %v337, %v404
  %v418 = vmax.f32 %v339, %v406
  %v419 = vmax.f32 %v342, %v409
  %v420 = vmax.f32 %v344, %v411
  %v421 = vmax.f32 %v413, %v417
  %v422 = vmax.f32 %v414, %v418
  %v423 = vmax.f32 %v415, %v419
  %v424 = vmax.f32 %v416, %v420
  %v425 = vld [vmem:[%s2] sm:$0x1]
  %v427 = vperm.slane %v425, 0
  %v429 = vadd.f32 %v421, %v427
  %v430 = vadd.f32 %v422, %v427
  %v431 = vadd.f32 %v423, %v427
  %v432 = vadd.f32 %v424, %v427
  %v433 = vmax.f32 %v429, 0.0
  %v434 = vmax.f32 %v430, 0.0
  %v435 = vmax.f32 %v431, 0.0
  %v436 = vmax.f32 %v432, 0.0
  %vm437 = vcmask 162816
  %438 = vst.msk [vmem:[%s3] sm:$0xff] %vm437, %v433
  %439 = vst.msk [vmem:[%s3 + $0x8] sm:$0xff] %vm437, %v434
  %440 = vst.msk [vmem:[%s3 + $0x10] sm:$0xff] %vm437, %v435
  %441 = vst.msk [vmem:[%s3 + $0x18] sm:$0xff] %vm437, %v436
  // Predicated region
  $region14: #{mnist_conv_forward.4} parent=0 // pred_check
    _
  $region15: #{mnist_conv_forward.4} parent=0 // pred_check_branch
    %443 = sbr.rel (0) target = $region17
  $region16: #{mnist_conv_forward.4} parent=0 // pred_region
    _
  $region17: #{mnist_conv_forward.4} parent=0 // pred_fallthru
    _
  // Predicated region
  $region18: #{mnist_conv_forward.4} parent=0 // pred_check
    _
  $region19: #{mnist_conv_forward.4} parent=0 // pred_check_branch
    %445 = sbr.rel (0) target = $region21
  $region20: #{mnist_conv_forward.4} parent=0 // pred_region
    _
  $region21: #{mnist_conv_forward.4} parent=0 // pred_fallthru
    _

</llo_original>
